<compile_context>
chip_gen: v7x
topology: tpu7x:2x2x1
jax: 0.10.0
libtpu: 0.0.40
codegen_flags: <defaults>
</compile_context>

<pallas_src>
import functools

import jax
import jax.numpy as jnp
from jax.experimental import pallas as pl
from jax.experimental.pallas import tpu as pltpu

HIDDEN = 768      # wavlm-base-plus hidden_size
AUDIO_EMB = 128   # audio_proj out
DEMO_IN = 4       # demo features
DEMO_EMB = 32     # demo_proj out
CLS_HID = 64      # classifier hidden
N_CLASSES = 2


def _round_up(x, m):
    return ((x + m - 1) // m) * m


def _model_kernel(hid_ref, demo_ref,
                  wa_ref, ba_ref,
                  wd_ref, bd_ref,
                  w1a_ref, w1d_ref, b1_ref,
                  w2_ref, b2_ref,
                  out_ref, acc_ref,
                  *, t_total, t_tile):
    t = pl.program_id(1)
    n_t = pl.num_programs(1)

    # ---- init running time-sum accumulator at the first reduction step ----
    @pl.when(t == 0)
    def _init():
        acc_ref[...] = jnp.zeros_like(acc_ref)

    # ---- accumulate sum over this time tile (f32 accumulation) ----
    hid = hid_ref[...].astype(jnp.float32)
    if t_total % t_tile != 0:
        # Tail tile extends past T: zero the padded (garbage) rows so the
        # mean stays unbiased.
        pos = t * t_tile + jax.lax.broadcasted_iota(jnp.int32, hid.shape, 1)
        hid = jnp.where(pos < t_total, hid, 0.0)
    acc_ref[...] += jnp.sum(hid, axis=1)

    # ---- finalize once per batch tile: mean, projections, classifier ----
    @pl.when(t == n_t - 1)
    def _finalize():
        audio_feat = acc_ref[...] * (1.0 / t_total)          # (bt, 768) mean

        audio_emb = (jnp.dot(audio_feat, wa_ref[...],
                             preferred_element_type=jnp.float32)
                     + ba_ref[...])                          # (bt, 128)

        # demo_proj on the VPU: K=4 unrolled broadcast multiply-add.
        demo = demo_ref[...].astype(jnp.float32)             # (bt, 4)
        demo_emb = jnp.broadcast_to(bd_ref[...], (demo.shape[0], DEMO_EMB))
        for k in range(DEMO_IN):
            demo_emb = demo_emb + demo[:, k:k + 1] * wd_ref[k:k + 1, :]

        # classifier: ReLU -> Linear(160,64) -> ReLU -> Linear(64,2).
        # concat([audio_emb, demo_emb]) @ W1 done as a split matmul (exact:
        # relu commutes with the concat split), avoiding a lane-axis concat.
        a = jnp.maximum(audio_emb, 0.0)
        d = jnp.maximum(demo_emb, 0.0)
        h = (jnp.dot(a, w1a_ref[...], preferred_element_type=jnp.float32)
             + jnp.dot(d, w1d_ref[...], preferred_element_type=jnp.float32)
             + b1_ref[...])
        h = jnp.maximum(h, 0.0)
        logits = (jnp.dot(h, w2_ref[...], preferred_element_type=jnp.float32)
                  + b2_ref[...])
        out_ref[...] = logits.astype(out_ref.dtype)


def audio_demographic_forward(hidden_states, demo, params,
                              *, b_tile=8, t_tile=256):
    """hidden_states: (B, T, HIDDEN) WavLM last_hidden_state (f32 or bf16);
    demo: (B, 4)."""
    B, T, H = hidden_states.shape
    assert H == HIDDEN

    # Clamp tiles to the (8-aligned) problem size so tiny inputs don't DMA
    # huge padded blocks; defaults keep <= ~6 MiB/buffer for v5e/v6e/v7x.
    b_tile = min(b_tile, _round_up(B, 8))
    t_tile = min(t_tile, _round_up(T, 8))

    wa, ba, wd, bd, w1, b1, w2, b2 = (
        params["wa"], params["ba"], params["wd"], params["bd"],
        params["w1"], params["b1"], params["w2"], params["b2"])

    # Split classifier first-layer weight across the concat boundary (glue).
    w1a = w1[:AUDIO_EMB, :]          # (128, 64)
    w1d = w1[AUDIO_EMB:, :]          # (32, 64)

    # Biases as (1, N) rows so they broadcast over batch inside the kernel.
    ba2 = ba.reshape(1, -1)
    bd2 = bd.reshape(1, -1)
    b12 = b1.reshape(1, -1)
    b22 = b2.reshape(1, -1)

    grid = (pl.cdiv(B, b_tile), pl.cdiv(T, t_tile))   # reduction (T) axis last
    const = lambda b, t: (0, 0)                       # weights: DMA'd once

    kernel = functools.partial(_model_kernel, t_total=T, t_tile=t_tile)

    return pl.pallas_call(
        kernel,
        out_shape=jax.ShapeDtypeStruct((B, N_CLASSES), jnp.float32),
        grid=grid,
        in_specs=[
            pl.BlockSpec((b_tile, t_tile, HIDDEN), lambda b, t: (b, t, 0)),
            pl.BlockSpec((b_tile, DEMO_IN), lambda b, t: (b, 0)),
            pl.BlockSpec((HIDDEN, AUDIO_EMB), const),
            pl.BlockSpec((1, AUDIO_EMB), const),
            pl.BlockSpec((DEMO_IN, DEMO_EMB), const),
            pl.BlockSpec((1, DEMO_EMB), const),
            pl.BlockSpec((AUDIO_EMB, CLS_HID), const),
            pl.BlockSpec((DEMO_EMB, CLS_HID), const),
            pl.BlockSpec((1, CLS_HID), const),
            pl.BlockSpec((CLS_HID, N_CLASSES), const),
            pl.BlockSpec((1, N_CLASSES), const),
        ],
        out_specs=pl.BlockSpec((b_tile, N_CLASSES), lambda b, t: (b, 0)),
        scratch_shapes=[pltpu.VMEM((b_tile, HIDDEN), jnp.float32)],
        compiler_params=pltpu.CompilerParams(
            dimension_semantics=("parallel", "arbitrary")),
    )(hidden_states, demo, wa, ba2, wd, bd2, w1a, w1d, b12, w2, b22)


def _reference_forward(hidden_states, demo, params):
    audio_feat = jnp.mean(hidden_states.astype(jnp.float32), axis=1)
    audio_emb = audio_feat @ params["wa"] + params["ba"]
    demo_emb = demo @ params["wd"] + params["bd"]
    combined = jnp.concatenate([audio_emb, demo_emb], axis=1)
    h = jnp.maximum(combined, 0.0) @ params["w1"] + params["b1"]
    h = jnp.maximum(h, 0.0)
    return h @ params["w2"] + params["b2"]


def _init_params(key):
    ks = jax.random.split(key, 8)
    scale = 0.02
    return {
        "wa": scale * jax.random.normal(ks[0], (HIDDEN, AUDIO_EMB), jnp.float32),
        "ba": scale * jax.random.normal(ks[1], (AUDIO_EMB,), jnp.float32),
        "wd": scale * jax.random.normal(ks[2], (DEMO_IN, DEMO_EMB), jnp.float32),
        "bd": scale * jax.random.normal(ks[3], (DEMO_EMB,), jnp.float32),
        "w1": scale * jax.random.normal(ks[4], (AUDIO_EMB + DEMO_EMB, CLS_HID), jnp.float32),
        "b1": scale * jax.random.normal(ks[5], (CLS_HID,), jnp.float32),
        "w2": scale * jax.random.normal(ks[6], (CLS_HID, N_CLASSES), jnp.float32),
        "b2": scale * jax.random.normal(ks[7], (N_CLASSES,), jnp.float32),
    }


if __name__ == "__main__":
    key = jax.random.PRNGKey(0)
    k_hid, k_demo, k_par = jax.random.split(key, 3)

    # Small shapes; T chosen non-multiple of the tile to exercise the ragged
    # tail masking and the multi-step reduction pipeline.
    B, T = 2, 50
    hidden_states = jax.random.normal(k_hid, (B, T, HIDDEN), jnp.float32)
    demo = jax.random.normal(k_demo, (B, DEMO_IN), jnp.float32)
    params = _init_params(k_par)

    logits = audio_demographic_forward(hidden_states, demo, params,
                                       b_tile=8, t_tile=16)
    logits = jax.block_until_ready(logits)

    ref = _reference_forward(hidden_states, demo, params)
    assert logits.shape == (B, N_CLASSES)
    assert jnp.allclose(logits, ref, atol=1e-4, rtol=1e-4)

    print("KERNEL_OK")
</pallas_src>

<mosaic_0001>
module attributes {stable_mosaic.version = 11 : i64} {
  func.func @_model_kernel(%arg0: i32, %arg1: i32, %arg2: memref<8x16x768xf32, #tpu.memory_space<vmem>>, %arg3: memref<8x4xf32, #tpu.memory_space<vmem>>, %arg4: memref<768x128xf32, #tpu.memory_space<vmem>>, %arg5: memref<1x128xf32, #tpu.memory_space<vmem>>, %arg6: memref<4x32xf32, #tpu.memory_space<vmem>>, %arg7: memref<1x32xf32, #tpu.memory_space<vmem>>, %arg8: memref<128x64xf32, #tpu.memory_space<vmem>>, %arg9: memref<32x64xf32, #tpu.memory_space<vmem>>, %arg10: memref<1x64xf32, #tpu.memory_space<vmem>>, %arg11: memref<64x2xf32, #tpu.memory_space<vmem>>, %arg12: memref<1x2xf32, #tpu.memory_space<vmem>>, %arg13: memref<8x2xf32, #tpu.memory_space<vmem>>, %arg14: memref<8x768xf32, #tpu.memory_space<vmem>>) attributes {dimension_semantics = [#tpu.dimension_semantics<parallel>, #tpu.dimension_semantics<arbitrary>], iteration_bounds = array<i64: 1, 4>, scalar_prefetch = 0 : i64, scratch_operands = 1 : i64, tpu.core_type = #tpu.core_type<tc>, window_params = [{transform_indices = @transform_0, window_bounds = array<i64: 8, 16, 768>}, {transform_indices = @transform_1, window_bounds = array<i64: 8, 4>}, {pipeline_mode = #tpu.pipeline_mode<synchronous>, transform_indices = @transform_2, window_bounds = array<i64: 768, 128>}, {pipeline_mode = #tpu.pipeline_mode<synchronous>, transform_indices = @transform_3, window_bounds = array<i64: 1, 128>}, {pipeline_mode = #tpu.pipeline_mode<synchronous>, transform_indices = @transform_4, window_bounds = array<i64: 4, 32>}, {pipeline_mode = #tpu.pipeline_mode<synchronous>, transform_indices = @transform_5, window_bounds = array<i64: 1, 32>}, {pipeline_mode = #tpu.pipeline_mode<synchronous>, transform_indices = @transform_6, window_bounds = array<i64: 128, 64>}, {pipeline_mode = #tpu.pipeline_mode<synchronous>, transform_indices = @transform_7, window_bounds = array<i64: 32, 64>}, {pipeline_mode = #tpu.pipeline_mode<synchronous>, transform_indices = @transform_8, window_bounds = array<i64: 1, 64>}, {pipeline_mode = #tpu.pipeline_mode<synchronous>, transform_indices = @transform_9, window_bounds = array<i64: 64, 2>}, {pipeline_mode = #tpu.pipeline_mode<synchronous>, transform_indices = @transform_10, window_bounds = array<i64: 1, 2>}, {transform_indices = @transform_11, window_bounds = array<i64: 8, 2>}]} {
    %c0_i32 = arith.constant 0 : i32
    %0 = arith.cmpi eq, %arg1, %c0_i32 : i32
    %1 = arith.extui %0 : i1 to i32
    %c0_i32_0 = arith.constant 0 : i32
    %2 = arith.cmpi ne, %1, %c0_i32_0 : i32
    scf.if %2 {
      %cst_9 = arith.constant 0.000000e+00 : f32
      %19 = vector.broadcast %cst_9 : f32 to vector<8x768xf32>
      %c0_10 = arith.constant 0 : index
      %c0_11 = arith.constant 0 : index
      %20 = vector.load %arg14[%c0_10, %c0_11] : memref<8x768xf32, #tpu.memory_space<vmem>>, vector<8x768xf32>
      tpu.vector_store %arg14[%c0_10, %c0_11], %19 {strides = array<i32>} : memref<8x768xf32, #tpu.memory_space<vmem>>, vector<8x768xf32>,
    } else {
    }
    %c0 = arith.constant 0 : index
    %c0_1 = arith.constant 0 : index
    %c0_2 = arith.constant 0 : index
    %3 = vector.load %arg2[%c0, %c0_1, %c0_2] : memref<8x16x768xf32, #tpu.memory_space<vmem>>, vector<8x16x768xf32>
    %c16_i32 = arith.constant 16 : i32
    %4 = arith.muli %arg1, %c16_i32 : i32
    %5 = tpu.iota {dimensions = array<i32: 1>} : vector<8x16x768xi32>
    %6 = vector.broadcast %4 : i32 to vector<8x16x768xi32>
    %7 = arith.addi %6, %5 : vector<8x16x768xi32>
    %c50_i32 = arith.constant 50 : i32
    %8 = vector.broadcast %c50_i32 : i32 to vector<8x16x768xi32>
    %9 = arith.cmpi slt, %7, %8 : vector<8x16x768xi32>
    %cst = arith.constant 0.000000e+00 : f32
    %10 = vector.broadcast %cst : f32 to vector<8x16x768xf32>
    %11 = arith.select %9, %3, %10 : vector<8x16x768xi1>, vector<8x16x768xf32>
    %c0_3 = arith.constant 0 : index
    %c0_4 = arith.constant 0 : index
    %12 = vector.load %arg14[%c0_3, %c0_4] : memref<8x768xf32, #tpu.memory_space<vmem>>, vector<8x768xf32>
    %cst_5 = arith.constant dense<0.000000e+00> : vector<8x768xf32>
    %13 = vector.multi_reduction <add>, %11, %cst_5 [1] : vector<8x16x768xf32> to vector<8x768xf32>
    %14 = arith.addf %12, %13 : vector<8x768xf32>
    %c0_6 = arith.constant 0 : index
    %c0_7 = arith.constant 0 : index
    %15 = vector.load %arg14[%c0_6, %c0_7] : memref<8x768xf32, #tpu.memory_space<vmem>>, vector<8x768xf32>
    tpu.vector_store %arg14[%c0_6, %c0_7], %14 {strides = array<i32>} : memref<8x768xf32, #tpu.memory_space<vmem>>, vector<8x768xf32>,
    %c3_i32 = arith.constant 3 : i32
    %16 = arith.cmpi eq, %arg1, %c3_i32 : i32
    %17 = arith.extui %16 : i1 to i32
    %c0_i32_8 = arith.constant 0 : i32
    %18 = arith.cmpi ne, %17, %c0_i32_8 : i32
    scf.if %18 {
      %c0_9 = arith.constant 0 : index
      %c0_10 = arith.constant 0 : index
      %19 = vector.load %arg14[%c0_9, %c0_10] : memref<8x768xf32, #tpu.memory_space<vmem>>, vector<8x768xf32>
      %cst_11 = arith.constant 2.000000e-02 : f32
      %20 = vector.broadcast %cst_11 : f32 to vector<8x768xf32>
      %21 = arith.mulf %19, %20 : vector<8x768xf32>
      %c0_12 = arith.constant 0 : index
      %c0_13 = arith.constant 0 : index
      %22 = vector.load %arg4[%c0_12, %c0_13] : memref<768x128xf32, #tpu.memory_space<vmem>>, vector<768x128xf32>
      %cst_14 = arith.constant dense<0.000000e+00> : vector<8x128xf32>
      %23 = tpu.matmul %21, %22, %cst_14 {dimension_numbers = #tpu.dot_dimension_numbers<[1], [0], [0], [1], [0, 0, 1, 1], [], []>} : vector<8x768xf32>, vector<768x128xf32>, vector<8x128xf32> -> vector<8x128xf32>
      %c0_15 = arith.constant 0 : index
      %c0_16 = arith.constant 0 : index
      %24 = vector.load %arg5[%c0_15, %c0_16] : memref<1x128xf32, #tpu.memory_space<vmem>>, vector<1x128xf32>
      %25 = vector.broadcast %24 : vector<1x128xf32> to vector<8x128xf32>
      %26 = arith.addf %23, %25 : vector<8x128xf32>
      %c0_17 = arith.constant 0 : index
      %c0_18 = arith.constant 0 : index
      %27 = vector.load %arg3[%c0_17, %c0_18] : memref<8x4xf32, #tpu.memory_space<vmem>>, vector<8x4xf32>
      %c0_19 = arith.constant 0 : index
      %c0_20 = arith.constant 0 : index
      %28 = vector.load %arg7[%c0_19, %c0_20] : memref<1x32xf32, #tpu.memory_space<vmem>>, vector<1x32xf32>
      %29 = vector.shape_cast %28 : vector<1x32xf32> to vector<1x32xf32>
      %30 = vector.broadcast %29 : vector<1x32xf32> to vector<8x32xf32>
      %31 = vector.extract_strided_slice %27 {offsets = [0, 0], sizes = [8, 1], strides = [1, 1]} : vector<8x4xf32> to vector<8x1xf32>
      %c0_21 = arith.constant 0 : index
      %c0_22 = arith.constant 0 : index
      %32 = vector.load %arg6[%c0_21, %c0_22] : memref<4x32xf32, #tpu.memory_space<vmem>>, vector<1x32xf32>
      %33 = vector.broadcast %31 : vector<8x1xf32> to vector<8x32xf32>
      %34 = vector.broadcast %32 : vector<1x32xf32> to vector<8x32xf32>
      %35 = arith.mulf %33, %34 : vector<8x32xf32>
      %36 = arith.addf %30, %35 : vector<8x32xf32>
      %37 = vector.extract_strided_slice %27 {offsets = [0, 1], sizes = [8, 1], strides = [1, 1]} : vector<8x4xf32> to vector<8x1xf32>
      %c1 = arith.constant 1 : index
      %c0_23 = arith.constant 0 : index
      %38 = vector.load %arg6[%c1, %c0_23] : memref<4x32xf32, #tpu.memory_space<vmem>>, vector<1x32xf32>
      %39 = vector.broadcast %37 : vector<8x1xf32> to vector<8x32xf32>
      %40 = vector.broadcast %38 : vector<1x32xf32> to vector<8x32xf32>
      %41 = arith.mulf %39, %40 : vector<8x32xf32>
      %42 = arith.addf %36, %41 : vector<8x32xf32>
      %43 = vector.extract_strided_slice %27 {offsets = [0, 2], sizes = [8, 1], strides = [1, 1]} : vector<8x4xf32> to vector<8x1xf32>
      %c2 = arith.constant 2 : index
      %c0_24 = arith.constant 0 : index
      %44 = vector.load %arg6[%c2, %c0_24] : memref<4x32xf32, #tpu.memory_space<vmem>>, vector<1x32xf32>
      %45 = vector.broadcast %43 : vector<8x1xf32> to vector<8x32xf32>
      %46 = vector.broadcast %44 : vector<1x32xf32> to vector<8x32xf32>
      %47 = arith.mulf %45, %46 : vector<8x32xf32>
      %48 = arith.addf %42, %47 : vector<8x32xf32>
      %49 = vector.extract_strided_slice %27 {offsets = [0, 3], sizes = [8, 1], strides = [1, 1]} : vector<8x4xf32> to vector<8x1xf32>
      %c3 = arith.constant 3 : index
      %c0_25 = arith.constant 0 : index
      %50 = vector.load %arg6[%c3, %c0_25] : memref<4x32xf32, #tpu.memory_space<vmem>>, vector<1x32xf32>
      %51 = vector.broadcast %49 : vector<8x1xf32> to vector<8x32xf32>
      %52 = vector.broadcast %50 : vector<1x32xf32> to vector<8x32xf32>
      %53 = arith.mulf %51, %52 : vector<8x32xf32>
      %54 = arith.addf %48, %53 : vector<8x32xf32>
      %cst_26 = arith.constant 0.000000e+00 : f32
      %55 = vector.broadcast %cst_26 : f32 to vector<8x128xf32>
      %56 = arith.maximumf %26, %55 : vector<8x128xf32>
      %cst_27 = arith.constant 0.000000e+00 : f32
      %57 = vector.broadcast %cst_27 : f32 to vector<8x32xf32>
      %58 = arith.maximumf %54, %57 : vector<8x32xf32>
      %c0_28 = arith.constant 0 : index
      %c0_29 = arith.constant 0 : index
      %59 = vector.load %arg8[%c0_28, %c0_29] : memref<128x64xf32, #tpu.memory_space<vmem>>, vector<128x64xf32>
      %cst_30 = arith.constant dense<0.000000e+00> : vector<8x64xf32>
      %60 = tpu.matmul %56, %59, %cst_30 {dimension_numbers = #tpu.dot_dimension_numbers<[1], [0], [0], [1], [0, 0, 1, 1], [], []>} : vector<8x128xf32>, vector<128x64xf32>, vector<8x64xf32> -> vector<8x64xf32>
      %c0_31 = arith.constant 0 : index
      %c0_32 = arith.constant 0 : index
      %61 = vector.load %arg9[%c0_31, %c0_32] : memref<32x64xf32, #tpu.memory_space<vmem>>, vector<32x64xf32>
      %cst_33 = arith.constant dense<0.000000e+00> : vector<8x64xf32>
      %62 = tpu.matmul %58, %61, %cst_33 {dimension_numbers = #tpu.dot_dimension_numbers<[1], [0], [0], [1], [0, 0, 1, 1], [], []>} : vector<8x32xf32>, vector<32x64xf32>, vector<8x64xf32> -> vector<8x64xf32>
      %63 = arith.addf %60, %62 : vector<8x64xf32>
      %c0_34 = arith.constant 0 : index
      %c0_35 = arith.constant 0 : index
      %64 = vector.load %arg10[%c0_34, %c0_35] : memref<1x64xf32, #tpu.memory_space<vmem>>, vector<1x64xf32>
      %65 = vector.broadcast %64 : vector<1x64xf32> to vector<8x64xf32>
      %66 = arith.addf %63, %65 : vector<8x64xf32>
      %cst_36 = arith.constant 0.000000e+00 : f32
      %67 = vector.broadcast %cst_36 : f32 to vector<8x64xf32>
      %68 = arith.maximumf %66, %67 : vector<8x64xf32>
      %c0_37 = arith.constant 0 : index
      %c0_38 = arith.constant 0 : index
      %69 = vector.load %arg11[%c0_37, %c0_38] : memref<64x2xf32, #tpu.memory_space<vmem>>, vector<64x2xf32>
      %cst_39 = arith.constant dense<0.000000e+00> : vector<8x2xf32>
      %70 = tpu.matmul %68, %69, %cst_39 {dimension_numbers = #tpu.dot_dimension_numbers<[1], [0], [0], [1], [0, 0, 1, 1], [], []>} : vector<8x64xf32>, vector<64x2xf32>, vector<8x2xf32> -> vector<8x2xf32>
      %c0_40 = arith.constant 0 : index
      %c0_41 = arith.constant 0 : index
      %71 = vector.load %arg12[%c0_40, %c0_41] : memref<1x2xf32, #tpu.memory_space<vmem>>, vector<1x2xf32>
      %72 = vector.broadcast %71 : vector<1x2xf32> to vector<8x2xf32>
      %73 = arith.addf %70, %72 : vector<8x2xf32>
      %c0_42 = arith.constant 0 : index
      %c0_43 = arith.constant 0 : index
      %74 = vector.load %arg13[%c0_42, %c0_43] : memref<8x2xf32, #tpu.memory_space<vmem>>, vector<8x2xf32>
      tpu.vector_store %arg13[%c0_42, %c0_43], %73 {strides = array<i32>} : memref<8x2xf32, #tpu.memory_space<vmem>>, vector<8x2xf32>,
    } else {
    }
    return
  }
  func.func @transform_0(%arg0: i32, %arg1: i32) -> (i32, i32, i32) {
    %c0_i32 = arith.constant 0 : i32
    %c0_i32_0 = arith.constant 0 : i32
    return %arg0, %arg1, %c0_i32 : i32, i32, i32
  }
  func.func @transform_1(%arg0: i32, %arg1: i32) -> (i32, i32) {
    %c0_i32 = arith.constant 0 : i32
    %c0_i32_0 = arith.constant 0 : i32
    return %arg0, %c0_i32 : i32, i32
  }
  func.func @transform_2(%arg0: i32, %arg1: i32) -> (i32, i32) {
    %c0_i32 = arith.constant 0 : i32
    %c0_i32_0 = arith.constant 0 : i32
    %c0_i32_1 = arith.constant 0 : i32
    return %c0_i32, %c0_i32_0 : i32, i32
  }
  func.func @transform_3(%arg0: i32, %arg1: i32) -> (i32, i32) {
    %c0_i32 = arith.constant 0 : i32
    %c0_i32_0 = arith.constant 0 : i32
    %c0_i32_1 = arith.constant 0 : i32
    return %c0_i32, %c0_i32_0 : i32, i32
  }
  func.func @transform_4(%arg0: i32, %arg1: i32) -> (i32, i32) {
    %c0_i32 = arith.constant 0 : i32
    %c0_i32_0 = arith.constant 0 : i32
    %c0_i32_1 = arith.constant 0 : i32
    return %c0_i32, %c0_i32_0 : i32, i32
  }
  func.func @transform_5(%arg0: i32, %arg1: i32) -> (i32, i32) {
    %c0_i32 = arith.constant 0 : i32
    %c0_i32_0 = arith.constant 0 : i32
    %c0_i32_1 = arith.constant 0 : i32
    return %c0_i32, %c0_i32_0 : i32, i32
  }
  func.func @transform_6(%arg0: i32, %arg1: i32) -> (i32, i32) {
    %c0_i32 = arith.constant 0 : i32
    %c0_i32_0 = arith.constant 0 : i32
    %c0_i32_1 = arith.constant 0 : i32
    return %c0_i32, %c0_i32_0 : i32, i32
  }
  func.func @transform_7(%arg0: i32, %arg1: i32) -> (i32, i32) {
    %c0_i32 = arith.constant 0 : i32
    %c0_i32_0 = arith.constant 0 : i32
    %c0_i32_1 = arith.constant 0 : i32
    return %c0_i32, %c0_i32_0 : i32, i32
  }
  func.func @transform_8(%arg0: i32, %arg1: i32) -> (i32, i32) {
    %c0_i32 = arith.constant 0 : i32
    %c0_i32_0 = arith.constant 0 : i32
    %c0_i32_1 = arith.constant 0 : i32
    return %c0_i32, %c0_i32_0 : i32, i32
  }
  func.func @transform_9(%arg0: i32, %arg1: i32) -> (i32, i32) {
    %c0_i32 = arith.constant 0 : i32
    %c0_i32_0 = arith.constant 0 : i32
    %c0_i32_1 = arith.constant 0 : i32
    return %c0_i32, %c0_i32_0 : i32, i32
  }
  func.func @transform_10(%arg0: i32, %arg1: i32) -> (i32, i32) {
    %c0_i32 = arith.constant 0 : i32
    %c0_i32_0 = arith.constant 0 : i32
    %c0_i32_1 = arith.constant 0 : i32
    return %c0_i32, %c0_i32_0 : i32, i32
  }
  func.func @transform_11(%arg0: i32, %arg1: i32) -> (i32, i32) {
    %c0_i32 = arith.constant 0 : i32
    %c0_i32_0 = arith.constant 0 : i32
    return %arg0, %c0_i32 : i32, i32
  }
}

</mosaic_0001>

<llo_original>
// kernel: tpu_custom_call.1
$region0: #{tpu_custom_call.1}
  #allocation0 [shape = 'u32[]', space=smem, size = 0x4, offset = 0x4, fixed_abs, tag = 'smem constant byte address 0x4 - core index']
  #allocation1 [shape = 'u32[144,128]{1,0:T(1,128)}', space=vmem, size = 0x12000, scoped, tag = 'internal scratch']
  #allocation2 [shape = 'f32[8,768]{1,0:T(8,128)}', space=vmem, size = 0x6000, scoped, tag = 'scratch operand']
  %s0 = inlined_call_operand.vmem [shape: f32[2,50,768], index: 0, kind: input, shape index: {}]
  %s1 = inlined_call_operand.vmem [shape: f32[2,4], index: 1, kind: input, shape index: {}]
  %s2 = inlined_call_operand.vmem [shape: f32[768,128], index: 2, kind: input, shape index: {}]
  %s3 = inlined_call_operand.vmem [shape: f32[1,128], index: 3, kind: input, shape index: {}]
  %s4 = inlined_call_operand.vmem [shape: f32[4,32], index: 4, kind: input, shape index: {}]
  %s5 = inlined_call_operand.vmem [shape: f32[1,32], index: 5, kind: input, shape index: {}]
  %s6 = inlined_call_operand.vmem [shape: f32[128,64], index: 6, kind: input, shape index: {}]
  %s7 = inlined_call_operand.vmem [shape: f32[32,64], index: 7, kind: input, shape index: {}]
  %s8 = inlined_call_operand.vmem [shape: f32[1,64], index: 8, kind: input, shape index: {}]
  %s9 = inlined_call_operand.vmem [shape: f32[64,2], index: 9, kind: input, shape index: {}]
  %s10 = inlined_call_operand.vmem [shape: f32[1,2], index: 10, kind: input, shape index: {}]
  %s11 = inlined_call_operand.hbm [shape: f32[2,2], index: 11, kind: output, shape index: {}]
  %s12 = sld [smem:[#allocation0]]
  $region122: #{tpu_custom_call.1} parent=0
    _
  %s14 = ssub.s32 1, %s12
  %s15 = scalar_select 0, %s14, %s12
  $region1: #{tpu_custom_call.1} parent=0
    #allocation3 [shape = 'u8[786432]{0}', space=vmem, size = 0xc0000, scoped, tag = 'input window, operand 0']
    #allocation4 [shape = 'u8[4096]{0}', space=vmem, size = 0x1000, scoped, tag = 'output window, operand 0, single buffered']
    #allocation5 [shape = 's32[2]{0}', space=sflag, size = 0x8, scoped, tag = 'scoped memory for tpu_custom_call.1']
    %16 = vsyncpa [#allocation5], 0
    loop: start=0, step=1, limit=6
    $region2: #{tpu_custom_call.1} parent=1 // loop_pre_header
      _
    $region3: #{tpu_custom_call.1} parent=1 // loop_header
      %s18 = sphi 0, %s22
      %p19 = scmp.ge.s32.totalorder %s18, 6
      %s25 = sphi 0, %s37
      %s26 = sphi 0, %s33
      %s27 = sphi 0, %s25
      %s28 = sphi 0, %s26
      %s29 = sphi 0, %s27
      %s30 = sphi 0, %s28
      %s42 = sphi 0, %s44
      %s45 = sphi 0, %s42
      %s46 = sphi 0, %s45
      %s62 = sphi 0, %s46
      %s68 = sphi 0, %s70
      %s71 = sphi 0, %s68
      %s72 = sphi 0, %s71
      %s88 = sphi 0, %s72
      %s92 = sphi 0, %s92
      %s94 = sphi 0, %s92
      %s95 = sphi 0, %s94
      %s109 = sphi 0, %s95
      %s113 = sphi 0, %s113
      %s115 = sphi 0, %s113
      %s116 = sphi 0, %s115
      %s130 = sphi 0, %s116
      %s134 = sphi 0, %s134
      %s136 = sphi 0, %s134
      %s137 = sphi 0, %s136
      %s151 = sphi 0, %s137
      %s155 = sphi 0, %s155
      %s157 = sphi 0, %s155
      %s158 = sphi 0, %s157
      %s172 = sphi 0, %s158
      %s176 = sphi 0, %s176
      %s178 = sphi 0, %s176
      %s179 = sphi 0, %s178
      %s193 = sphi 0, %s179
      %s197 = sphi 0, %s197
      %s199 = sphi 0, %s197
      %s200 = sphi 0, %s199
      %s214 = sphi 0, %s200
      %s218 = sphi 0, %s218
      %s220 = sphi 0, %s218
      %s221 = sphi 0, %s220
      %s235 = sphi 0, %s221
      %s239 = sphi 0, %s239
      %s241 = sphi 0, %s239
      %s242 = sphi 0, %s241
      %s256 = sphi 0, %s242
      %s260 = sphi 0, %s260
      %s262 = sphi 0, %s260
      %s263 = sphi 0, %s262
      %s277 = sphi 0, %s263
      %s283 = sphi 0, %s285
      %s286 = sphi 0, %s283
      %s287 = sphi 0, %s286
      %s303 = sphi 0, %s287
    $region4: #{tpu_custom_call.1} parent=1 // loop_header_branch
      %21 = sbr.rel (%p19) target = $region8
    $region5: #{tpu_custom_call.1} parent=1 // loop_body
      %s23 = ssub.s32 %s18, 1
      %s24 = ssub.s32 %s18, 2
      %s31 = sadd.s32 1, %s26
      %p32 = scmp.ge.s32.totalorder %s31, 4
      %s33 = scalar_select %p32, 0, %s31
      %s34 = sadd.s32 1, %s25
      %s35 = scalar_select %p32, %s34, %s25
      %p36 = scmp.ge.s32.totalorder %s35, 1
      %s37 = scalar_select %p36, 0, %s35
      %s38 = ssub.s32 %s25, %s37
      %s39 = ssub.s32 %s26, %s33
      %s40 = sor.u32 %s38, %s39
      %p41 = scmp.eq.s32.totalorder %s40, 0
      %s43 = sadd.s32 %s42, 1
      %s44 = scalar_select %p41, %s42, %s43
      %p47 = pneg %p41
      %p48 = scmp.eq.s32.totalorder %s18, 3
      %p49 = por %p47, %p48
      %p50 = scmp.ne.s32.totalorder %s42, %s45
      %p51 = scmp.eq.s32.totalorder %s18, 0
      %p52 = por %p50, %p51
      %p53 = scmp.ne.s32.totalorder %s42, %s45
      %p54 = scmp.eq.s32.totalorder %s23, 3
      %p55 = por %p53, %p54
      %p56 = scmp.ne.s32.totalorder %s45, %s46
      %p57 = scmp.eq.s32.totalorder %s23, 0
      %p58 = por %p56, %p57
      %p59 = scmp.ne.s32.totalorder %s45, %s46
      %p60 = scmp.eq.s32.totalorder %s24, 3
      %p61 = por %p59, %p60
      %p63 = scmp.ne.s32.totalorder %s46, %s62
      %p64 = scmp.eq.s32.totalorder %s24, 0
      %p65 = por %p63, %p64
      %s66 = ssub.s32 %s25, %s37
      %p67 = scmp.eq.s32.totalorder %s66, 0
      %s69 = sadd.s32 %s68, 1
      %s70 = scalar_select %p67, %s68, %s69
      %p73 = pneg %p67
      %p74 = scmp.eq.s32.totalorder %s18, 3
      %p75 = por %p73, %p74
      %p76 = scmp.ne.s32.totalorder %s68, %s71
      %p77 = scmp.eq.s32.totalorder %s18, 0
      %p78 = por %p76, %p77
      %p79 = scmp.ne.s32.totalorder %s68, %s71
      %p80 = scmp.eq.s32.totalorder %s23, 3
      %p81 = por %p79, %p80
      %p82 = scmp.ne.s32.totalorder %s71, %s72
      %p83 = scmp.eq.s32.totalorder %s23, 0
      %p84 = por %p82, %p83
      %p85 = scmp.ne.s32.totalorder %s71, %s72
      %p86 = scmp.eq.s32.totalorder %s24, 3
      %p87 = por %p85, %p86
      %p89 = scmp.ne.s32.totalorder %s72, %s88
      %p90 = scmp.eq.s32.totalorder %s24, 0
      %p91 = por %p89, %p90
      %s93 = sadd.s32 %s92, 1
      %p96 = scmp.eq.s32.totalorder %s18, 3
      %p97 = scmp.ne.s32.totalorder %s92, %s94
      %p98 = scmp.eq.s32.totalorder %s18, 0
      %p99 = por %p97, %p98
      %p100 = scmp.ne.s32.totalorder %s92, %s94
      %p101 = scmp.eq.s32.totalorder %s23, 3
      %p102 = por %p100, %p101
      %p103 = scmp.ne.s32.totalorder %s94, %s95
      %p104 = scmp.eq.s32.totalorder %s23, 0
      %p105 = por %p103, %p104
      %p106 = scmp.ne.s32.totalorder %s94, %s95
      %p107 = scmp.eq.s32.totalorder %s24, 3
      %p108 = por %p106, %p107
      %p110 = scmp.ne.s32.totalorder %s95, %s109
      %p111 = scmp.eq.s32.totalorder %s24, 0
      %p112 = por %p110, %p111
      %s114 = sadd.s32 %s113, 1
      %p117 = scmp.eq.s32.totalorder %s18, 3
      %p118 = scmp.ne.s32.totalorder %s113, %s115
      %p119 = scmp.eq.s32.totalorder %s18, 0
      %p120 = por %p118, %p119
      %p121 = scmp.ne.s32.totalorder %s113, %s115
      %p122 = scmp.eq.s32.totalorder %s23, 3
      %p123 = por %p121, %p122
      %p124 = scmp.ne.s32.totalorder %s115, %s116
      %p125 = scmp.eq.s32.totalorder %s23, 0
      %p126 = por %p124, %p125
      %p127 = scmp.ne.s32.totalorder %s115, %s116
      %p128 = scmp.eq.s32.totalorder %s24, 3
      %p129 = por %p127, %p128
      %p131 = scmp.ne.s32.totalorder %s116, %s130
      %p132 = scmp.eq.s32.totalorder %s24, 0
      %p133 = por %p131, %p132
      %s135 = sadd.s32 %s134, 1
      %p138 = scmp.eq.s32.totalorder %s18, 3
      %p139 = scmp.ne.s32.totalorder %s134, %s136
      %p140 = scmp.eq.s32.totalorder %s18, 0
      %p141 = por %p139, %p140
      %p142 = scmp.ne.s32.totalorder %s134, %s136
      %p143 = scmp.eq.s32.totalorder %s23, 3
      %p144 = por %p142, %p143
      %p145 = scmp.ne.s32.totalorder %s136, %s137
      %p146 = scmp.eq.s32.totalorder %s23, 0
      %p147 = por %p145, %p146
      %p148 = scmp.ne.s32.totalorder %s136, %s137
      %p149 = scmp.eq.s32.totalorder %s24, 3
      %p150 = por %p148, %p149
      %p152 = scmp.ne.s32.totalorder %s137, %s151
      %p153 = scmp.eq.s32.totalorder %s24, 0
      %p154 = por %p152, %p153
      %s156 = sadd.s32 %s155, 1
      %p159 = scmp.eq.s32.totalorder %s18, 3
      %p160 = scmp.ne.s32.totalorder %s155, %s157
      %p161 = scmp.eq.s32.totalorder %s18, 0
      %p162 = por %p160, %p161
      %p163 = scmp.ne.s32.totalorder %s155, %s157
      %p164 = scmp.eq.s32.totalorder %s23, 3
      %p165 = por %p163, %p164
      %p166 = scmp.ne.s32.totalorder %s157, %s158
      %p167 = scmp.eq.s32.totalorder %s23, 0
      %p168 = por %p166, %p167
      %p169 = scmp.ne.s32.totalorder %s157, %s158
      %p170 = scmp.eq.s32.totalorder %s24, 3
      %p171 = por %p169, %p170
      %p173 = scmp.ne.s32.totalorder %s158, %s172
      %p174 = scmp.eq.s32.totalorder %s24, 0
      %p175 = por %p173, %p174
      %s177 = sadd.s32 %s176, 1
      %p180 = scmp.eq.s32.totalorder %s18, 3
      %p181 = scmp.ne.s32.totalorder %s176, %s178
      %p182 = scmp.eq.s32.totalorder %s18, 0
      %p183 = por %p181, %p182
      %p184 = scmp.ne.s32.totalorder %s176, %s178
      %p185 = scmp.eq.s32.totalorder %s23, 3
      %p186 = por %p184, %p185
      %p187 = scmp.ne.s32.totalorder %s178, %s179
      %p188 = scmp.eq.s32.totalorder %s23, 0
      %p189 = por %p187, %p188
      %p190 = scmp.ne.s32.totalorder %s178, %s179
      %p191 = scmp.eq.s32.totalorder %s24, 3
      %p192 = por %p190, %p191
      %p194 = scmp.ne.s32.totalorder %s179, %s193
      %p195 = scmp.eq.s32.totalorder %s24, 0
      %p196 = por %p194, %p195
      %s198 = sadd.s32 %s197, 1
      %p201 = scmp.eq.s32.totalorder %s18, 3
      %p202 = scmp.ne.s32.totalorder %s197, %s199
      %p203 = scmp.eq.s32.totalorder %s18, 0
      %p204 = por %p202, %p203
      %p205 = scmp.ne.s32.totalorder %s197, %s199
      %p206 = scmp.eq.s32.totalorder %s23, 3
      %p207 = por %p205, %p206
      %p208 = scmp.ne.s32.totalorder %s199, %s200
      %p209 = scmp.eq.s32.totalorder %s23, 0
      %p210 = por %p208, %p209
      %p211 = scmp.ne.s32.totalorder %s199, %s200
      %p212 = scmp.eq.s32.totalorder %s24, 3
      %p213 = por %p211, %p212
      %p215 = scmp.ne.s32.totalorder %s200, %s214
      %p216 = scmp.eq.s32.totalorder %s24, 0
      %p217 = por %p215, %p216
      %s219 = sadd.s32 %s218, 1
      %p222 = scmp.eq.s32.totalorder %s18, 3
      %p223 = scmp.ne.s32.totalorder %s218, %s220
      %p224 = scmp.eq.s32.totalorder %s18, 0
      %p225 = por %p223, %p224
      %p226 = scmp.ne.s32.totalorder %s218, %s220
      %p227 = scmp.eq.s32.totalorder %s23, 3
      %p228 = por %p226, %p227
      %p229 = scmp.ne.s32.totalorder %s220, %s221
      %p230 = scmp.eq.s32.totalorder %s23, 0
      %p231 = por %p229, %p230
      %p232 = scmp.ne.s32.totalorder %s220, %s221
      %p233 = scmp.eq.s32.totalorder %s24, 3
      %p234 = por %p232, %p233
      %p236 = scmp.ne.s32.totalorder %s221, %s235
      %p237 = scmp.eq.s32.totalorder %s24, 0
      %p238 = por %p236, %p237
      %s240 = sadd.s32 %s239, 1
      %p243 = scmp.eq.s32.totalorder %s18, 3
      %p244 = scmp.ne.s32.totalorder %s239, %s241
      %p245 = scmp.eq.s32.totalorder %s18, 0
      %p246 = por %p244, %p245
      %p247 = scmp.ne.s32.totalorder %s239, %s241
      %p248 = scmp.eq.s32.totalorder %s23, 3
      %p249 = por %p247, %p248
      %p250 = scmp.ne.s32.totalorder %s241, %s242
      %p251 = scmp.eq.s32.totalorder %s23, 0
      %p252 = por %p250, %p251
      %p253 = scmp.ne.s32.totalorder %s241, %s242
      %p254 = scmp.eq.s32.totalorder %s24, 3
      %p255 = por %p253, %p254
      %p257 = scmp.ne.s32.totalorder %s242, %s256
      %p258 = scmp.eq.s32.totalorder %s24, 0
      %p259 = por %p257, %p258
      %s261 = sadd.s32 %s260, 1
      %p264 = scmp.eq.s32.totalorder %s18, 3
      %p265 = scmp.ne.s32.totalorder %s260, %s262
      %p266 = scmp.eq.s32.totalorder %s18, 0
      %p267 = por %p265, %p266
      %p268 = scmp.ne.s32.totalorder %s260, %s262
      %p269 = scmp.eq.s32.totalorder %s23, 3
      %p270 = por %p268, %p269
      %p271 = scmp.ne.s32.totalorder %s262, %s263
      %p272 = scmp.eq.s32.totalorder %s23, 0
      %p273 = por %p271, %p272
      %p274 = scmp.ne.s32.totalorder %s262, %s263
      %p275 = scmp.eq.s32.totalorder %s24, 3
      %p276 = por %p274, %p275
      %p278 = scmp.ne.s32.totalorder %s263, %s277
      %p279 = scmp.eq.s32.totalorder %s24, 0
      %p280 = por %p278, %p279
      %s281 = ssub.s32 %s25, %s37
      %p282 = scmp.eq.s32.totalorder %s281, 0
      %s284 = sadd.s32 %s283, 1
      %s285 = scalar_select %p282, %s283, %s284
      %p288 = pneg %p282
      %p289 = scmp.eq.s32.totalorder %s18, 3
      %p290 = por %p288, %p289
      %p291 = scmp.ne.s32.totalorder %s283, %s286
      %p292 = scmp.eq.s32.totalorder %s18, 0
      %p293 = por %p291, %p292
      %p294 = scmp.ne.s32.totalorder %s283, %s286
      %p295 = scmp.eq.s32.totalorder %s23, 3
      %p296 = por %p294, %p295
      %p297 = scmp.ne.s32.totalorder %s286, %s287
      %p298 = scmp.eq.s32.totalorder %s23, 0
      %p299 = por %p297, %p298
      %p300 = scmp.ne.s32.totalorder %s286, %s287
      %p301 = scmp.eq.s32.totalorder %s24, 3
      %p302 = por %p300, %p301
      %p304 = scmp.ne.s32.totalorder %s287, %s303
      %p305 = scmp.eq.s32.totalorder %s24, 0
      %p306 = por %p304, %p305
      %p307 = scmp.le.s32.totalorder 1, %s18
      %p308 = scmp.lt.s32.totalorder %s18, 5
      %p309 = pnand %p307, %p308
      %p310 = pneg %p309
      // Predicated region
      $region9: #{tpu_custom_call.1} parent=5 // pred_check
        _
      $region10: #{tpu_custom_call.1} parent=5 // pred_check_branch
        %312 = sbr.rel (%p309) target = $region12
      $region11: #{tpu_custom_call.1} parent=5 // pred_region
        %s313 = ssub.s32 %s18, 1
        // Predicated region
        $region13: #{tpu_custom_call.1} parent=11 // pred_check
          %p314 = pneg %p84
        $region14: #{tpu_custom_call.1} parent=11 // pred_check_branch
          %316 = sbr.rel (%p314) target = $region16
        $region15: #{tpu_custom_call.1} parent=11 // pred_region
          %s317 = smul.u32 4, %s27
          %s318 = ssub.s32 1, %s317
          %s319 = smul.u32 32, %s318
          %p320 = scmp.lt.s32.totalorder %s317, 0
          %s321 = scalar_select %p320, %s317, 0
          %s322 = smul.addr %s321, 2
          %s323 = scalar_lea.vmem %s1, %s322
          %s324 = smul.u32 4, %s27
          %s325 = ssub.s32 1, %s324
          %s326 = smul.u32 32, %s325
        $region16: #{tpu_custom_call.1} parent=11 // pred_fallthru
          _
        // Predicated region
        $region17: #{tpu_custom_call.1} parent=11 // pred_check
          %p327 = pneg %p105
        $region18: #{tpu_custom_call.1} parent=11 // pred_check_branch
          %329 = sbr.rel (%p327) target = $region20
        $region19: #{tpu_custom_call.1} parent=11 // pred_region
          _
        $region20: #{tpu_custom_call.1} parent=11 // pred_fallthru
          _
        // Predicated region
        $region21: #{tpu_custom_call.1} parent=11 // pred_check
          %p330 = pneg %p126
        $region22: #{tpu_custom_call.1} parent=11 // pred_check_branch
          %332 = sbr.rel (%p330) target = $region24
        $region23: #{tpu_custom_call.1} parent=11 // pred_region
          _
        $region24: #{tpu_custom_call.1} parent=11 // pred_fallthru
          _
        // Predicated region
        $region25: #{tpu_custom_call.1} parent=11 // pred_check
          %p333 = pneg %p147
        $region26: #{tpu_custom_call.1} parent=11 // pred_check_branch
          %335 = sbr.rel (%p333) target = $region28
        $region27: #{tpu_custom_call.1} parent=11 // pred_region
          _
        $region28: #{tpu_custom_call.1} parent=11 // pred_fallthru
          _
        // Predicated region
        $region29: #{tpu_custom_call.1} parent=11 // pred_check
          %p336 = pneg %p168
        $region30: #{tpu_custom_call.1} parent=11 // pred_check_branch
          %338 = sbr.rel (%p336) target = $region32
        $region31: #{tpu_custom_call.1} parent=11 // pred_region
          _
        $region32: #{tpu_custom_call.1} parent=11 // pred_fallthru
          _
        // Predicated region
        $region33: #{tpu_custom_call.1} parent=11 // pred_check
          %p339 = pneg %p189
        $region34: #{tpu_custom_call.1} parent=11 // pred_check_branch
          %341 = sbr.rel (%p339) target = $region36
        $region35: #{tpu_custom_call.1} parent=11 // pred_region
          _
        $region36: #{tpu_custom_call.1} parent=11 // pred_fallthru
          _
        // Predicated region
        $region37: #{tpu_custom_call.1} parent=11 // pred_check
          %p342 = pneg %p210
        $region38: #{tpu_custom_call.1} parent=11 // pred_check_branch
          %344 = sbr.rel (%p342) target = $region40
        $region39: #{tpu_custom_call.1} parent=11 // pred_region
          _
        $region40: #{tpu_custom_call.1} parent=11 // pred_fallthru
          _
        // Predicated region
        $region41: #{tpu_custom_call.1} parent=11 // pred_check
          %p345 = pneg %p231
        $region42: #{tpu_custom_call.1} parent=11 // pred_check_branch
          %347 = sbr.rel (%p345) target = $region44
        $region43: #{tpu_custom_call.1} parent=11 // pred_region
          _
        $region44: #{tpu_custom_call.1} parent=11 // pred_fallthru
          _
        // Predicated region
        $region45: #{tpu_custom_call.1} parent=11 // pred_check
          %p348 = pneg %p252
        $region46: #{tpu_custom_call.1} parent=11 // pred_check_branch
          %350 = sbr.rel (%p348) target = $region48
        $region47: #{tpu_custom_call.1} parent=11 // pred_region
          _
        $region48: #{tpu_custom_call.1} parent=11 // pred_fallthru
          _
        // Predicated region
        $region49: #{tpu_custom_call.1} parent=11 // pred_check
          %p351 = pneg %p273
        $region50: #{tpu_custom_call.1} parent=11 // pred_check_branch
          %353 = sbr.rel (%p351) target = $region52
        $region51: #{tpu_custom_call.1} parent=11 // pred_region
          _
        $region52: #{tpu_custom_call.1} parent=11 // pred_fallthru
          _
      $region12: #{tpu_custom_call.1} parent=5 // pred_fallthru
        _
      %p354 = scmp.lt.s32.totalorder %s18, 4
      // Predicated region
      $region53: #{tpu_custom_call.1} parent=5 // pred_check
        %p355 = pneg %p354
      $region54: #{tpu_custom_call.1} parent=5 // pred_check_branch
        %357 = sbr.rel (%p355) target = $region56
      $region55: #{tpu_custom_call.1} parent=5 // pred_region
        // Predicated region
        $region57: #{tpu_custom_call.1} parent=55 // pred_check
          %p358 = pneg %p52
        $region58: #{tpu_custom_call.1} parent=55 // pred_check_branch
          %360 = sbr.rel (%p358) target = $region60
        $region59: #{tpu_custom_call.1} parent=55 // pred_region
          %s361 = sand.u32 %s42, 1
          %s362 = sand.u32 %s42, 1
          %s363 = smul.addr %s362, 768
          %s364 = scalar_lea.vmem [#allocation3], %s363
          %s365 = smul.u32 8, %s25
          %s366 = smul.u32 2, %s26
          %s367 = ssub.s32 2, %s365
          %s368 = smul.u32 128, %s367
          %s369 = ssub.s32 7, %s366
          %p370 = scmp.lt.s32.totalorder %s369, 2
          %s371 = scalar_select %p370, %s369, 2
          %s372 = smul.u32 %s368, %s371
          %s373 = smul.u32 %s372, 6
          %p374 = scmp.ne.s32.totalorder 0, %s373
          %s375 = smul.addr %s366, 6
          %s376 = smul.addr %s365, 42
          %s377 = sadd.s32 %s375, %s376
          %s378 = smul.addr %s377, 8
          %s379 = scalar_lea.vmem %s0, %s378
          // Predicated region
          $region61: #{tpu_custom_call.1} parent=59 // pred_check
            %p380 = pneg %p374
          $region62: #{tpu_custom_call.1} parent=59 // pred_check_branch
            %382 = sbr.rel (%p380) target = $region64
          $region63: #{tpu_custom_call.1} parent=59 // pred_region
            // Predicated region
            $region65: #{tpu_custom_call.1} parent=63 // pred_check
              _
            $region66: #{tpu_custom_call.1} parent=63 // pred_check_branch
              %384 = sbr.rel (0) target = $region68
            $region67: #{tpu_custom_call.1} parent=63 // pred_region
              %s385 = sshrl.u32 %s367, 1
              %s386 = sshrl.u32 %s371, 1
              %s387 = smul.u32 %s385, %s386
              // While loop
              $region69: #{tpu_custom_call.1} parent=67 // loop_pre_header
                _
              $region70: #{tpu_custom_call.1} parent=67 // loop_header
                %s389 = sphi 0, %s391
                %p390 = scmp.ge.s32.totalorder %s389, %s387
                %s394 = sphi 0, %s452
                %s395 = sphi 0, %s448
                %s396 = sphi %s379, %s459
                %s397 = sphi %s364, %s460
              $region71: #{tpu_custom_call.1} parent=67 // loop_header_branch
                %393 = sbr.rel (%p390) target = $region75
              $region72: #{tpu_custom_call.1} parent=67 // loop_body
                %v398 = vld [vmem:[%s396] sm:$0xff]
                %399 = vst [vmem:[%s397] sm:$0xff] %v398
                %v400 = vld [vmem:[%s396 + $0x30] sm:$0xff]
                %401 = vst [vmem:[%s397 + $0x30] sm:$0xff] %v400
                %v402 = vld [vmem:[%s396 + $0x150] sm:$0xff]
                %403 = vst [vmem:[%s397 + $0x60] sm:$0xff] %v402
                %v404 = vld [vmem:[%s396 + $0x180] sm:$0xff]
                %405 = vst [vmem:[%s397 + $0x90] sm:$0xff] %v404
                %v406 = vld [vmem:[%s396 + $0x8] sm:$0xff]
                %407 = vst [vmem:[%s397 + $0x8] sm:$0xff] %v406
                %v408 = vld [vmem:[%s396 + $0x38] sm:$0xff]
                %409 = vst [vmem:[%s397 + $0x38] sm:$0xff] %v408
                %v410 = vld [vmem:[%s396 + $0x158] sm:$0xff]
                %411 = vst [vmem:[%s397 + $0x68] sm:$0xff] %v410
                %v412 = vld [vmem:[%s396 + $0x188] sm:$0xff]
                %413 = vst [vmem:[%s397 + $0x98] sm:$0xff] %v412
                %v414 = vld [vmem:[%s396 + $0x10] sm:$0xff]
                %415 = vst [vmem:[%s397 + $0x10] sm:$0xff] %v414
                %v416 = vld [vmem:[%s396 + $0x40] sm:$0xff]
                %417 = vst [vmem:[%s397 + $0x40] sm:$0xff] %v416
                %v418 = vld [vmem:[%s396 + $0x160] sm:$0xff]
                %419 = vst [vmem:[%s397 + $0x70] sm:$0xff] %v418
                %v420 = vld [vmem:[%s396 + $0x190] sm:$0xff]
                %421 = vst [vmem:[%s397 + $0xa0] sm:$0xff] %v420
                %v422 = vld [vmem:[%s396 + $0x18] sm:$0xff]
                %423 = vst [vmem:[%s397 + $0x18] sm:$0xff] %v422
                %v424 = vld [vmem:[%s396 + $0x48] sm:$0xff]
                %425 = vst [vmem:[%s397 + $0x48] sm:$0xff] %v424
                %v426 = vld [vmem:[%s396 + $0x168] sm:$0xff]
                %427 = vst [vmem:[%s397 + $0x78] sm:$0xff] %v426
                %v428 = vld [vmem:[%s396 + $0x198] sm:$0xff]
                %429 = vst [vmem:[%s397 + $0xa8] sm:$0xff] %v428
                %v430 = vld [vmem:[%s396 + $0x20] sm:$0xff]
                %431 = vst [vmem:[%s397 + $0x20] sm:$0xff] %v430
                %v432 = vld [vmem:[%s396 + $0x50] sm:$0xff]
                %433 = vst [vmem:[%s397 + $0x50] sm:$0xff] %v432
                %v434 = vld [vmem:[%s396 + $0x170] sm:$0xff]
                %435 = vst [vmem:[%s397 + $0x80] sm:$0xff] %v434
                %v436 = vld [vmem:[%s396 + $0x1a0] sm:$0xff]
                %437 = vst [vmem:[%s397 + $0xb0] sm:$0xff] %v436
                %v438 = vld [vmem:[%s396 + $0x28] sm:$0xff]
                %439 = vst [vmem:[%s397 + $0x28] sm:$0xff] %v438
                %v440 = vld [vmem:[%s396 + $0x58] sm:$0xff]
                %441 = vst [vmem:[%s397 + $0x58] sm:$0xff] %v440
                %v442 = vld [vmem:[%s396 + $0x178] sm:$0xff]
                %443 = vst [vmem:[%s397 + $0x88] sm:$0xff] %v442
                %v444 = vld [vmem:[%s396 + $0x1a8] sm:$0xff]
                %445 = vst [vmem:[%s397 + $0xb8] sm:$0xff] %v444
                %s446 = sadd.s32 1, %s395
                %p447 = scmp.ge.s32.totalorder %s446, %s386
                %s448 = scalar_select %p447, 0, %s446
                %s449 = sadd.s32 1, %s394
                %s450 = scalar_select %p447, %s449, %s394
                %p451 = scmp.ge.s32.totalorder %s450, %s385
                %s452 = scalar_select %p451, 0, %s450
                %s453 = smul.u32 %s452, 672
                %s454 = smul.u32 %s448, 96
                %s455 = sadd.s32 %s453, %s454
                %s456 = smul.u32 %s452, 192
                %s457 = smul.u32 %s448, 96
                %s458 = sadd.s32 %s456, %s457
                %s459 = scalar_lea.vmem %s379, %s455
                %s460 = scalar_lea.vmem %s364, %s458 [#allocation3]
              $region73: #{tpu_custom_call.1} parent=67 // loop_footer
                %s391 = sadd.s32 %s389, 1
              $region74: #{tpu_custom_call.1} parent=67 // loop_footer_branch
                %388 = sbr.rel target = $region70
              $region75: #{tpu_custom_call.1} parent=67 // loop_exit
                _
              %s461 = sshrl.u32 %s371, 1
              %s462 = sshrl.u32 %s367, 1
              %s463 = sand.u32 %s367, 1
              %s464 = smul.u32 %s462, 2
              %s465 = smul.u32 336, %s464
              %s466 = scalar_lea.vmem %s379, %s465
              %s467 = smul.u32 96, %s464
              %s468 = scalar_lea.vmem %s364, %s467 [#allocation3]
              %s469 = smul.u32 %s463, %s461
              // While loop
              $region76: #{tpu_custom_call.1} parent=67 // loop_pre_header
                _
              $region77: #{tpu_custom_call.1} parent=67 // loop_header
                %s471 = sphi 0, %s473
                %p472 = scmp.ge.s32.totalorder %s471, %s469
                %s476 = sphi 0, %s510
                %s477 = sphi 0, %s506
                %s478 = sphi %s466, %s517
                %s479 = sphi %s468, %s518
              $region78: #{tpu_custom_call.1} parent=67 // loop_header_branch
                %475 = sbr.rel (%p472) target = $region82
              $region79: #{tpu_custom_call.1} parent=67 // loop_body
                %v480 = vld [vmem:[%s478] sm:$0xff]
                %481 = vst [vmem:[%s479] sm:$0xff] %v480
                %v482 = vld [vmem:[%s478 + $0x30] sm:$0xff]
                %483 = vst [vmem:[%s479 + $0x30] sm:$0xff] %v482
                %v484 = vld [vmem:[%s478 + $0x8] sm:$0xff]
                %485 = vst [vmem:[%s479 + $0x8] sm:$0xff] %v484
                %v486 = vld [vmem:[%s478 + $0x38] sm:$0xff]
                %487 = vst [vmem:[%s479 + $0x38] sm:$0xff] %v486
                %v488 = vld [vmem:[%s478 + $0x10] sm:$0xff]
                %489 = vst [vmem:[%s479 + $0x10] sm:$0xff] %v488
                %v490 = vld [vmem:[%s478 + $0x40] sm:$0xff]
                %491 = vst [vmem:[%s479 + $0x40] sm:$0xff] %v490
                %v492 = vld [vmem:[%s478 + $0x18] sm:$0xff]
                %493 = vst [vmem:[%s479 + $0x18] sm:$0xff] %v492
                %v494 = vld [vmem:[%s478 + $0x48] sm:$0xff]
                %495 = vst [vmem:[%s479 + $0x48] sm:$0xff] %v494
                %v496 = vld [vmem:[%s478 + $0x20] sm:$0xff]
                %497 = vst [vmem:[%s479 + $0x20] sm:$0xff] %v496
                %v498 = vld [vmem:[%s478 + $0x50] sm:$0xff]
                %499 = vst [vmem:[%s479 + $0x50] sm:$0xff] %v498
                %v500 = vld [vmem:[%s478 + $0x28] sm:$0xff]
                %501 = vst [vmem:[%s479 + $0x28] sm:$0xff] %v500
                %v502 = vld [vmem:[%s478 + $0x58] sm:$0xff]
                %503 = vst [vmem:[%s479 + $0x58] sm:$0xff] %v502
                %s504 = sadd.s32 1, %s477
                %p505 = scmp.ge.s32.totalorder %s504, %s461
                %s506 = scalar_select %p505, 0, %s504
                %s507 = sadd.s32 1, %s476
                %s508 = scalar_select %p505, %s507, %s476
                %p509 = scmp.ge.s32.totalorder %s508, %s463
                %s510 = scalar_select %p509, 0, %s508
                %s511 = smul.u32 %s510, 336
                %s512 = smul.u32 %s506, 96
                %s513 = sadd.s32 %s511, %s512
                %s514 = smul.u32 %s510, 96
                %s515 = smul.u32 %s506, 96
                %s516 = sadd.s32 %s514, %s515
                %s517 = scalar_lea.vmem %s466, %s513
                %s518 = scalar_lea.vmem %s468, %s516 [#allocation3]
              $region80: #{tpu_custom_call.1} parent=67 // loop_footer
                %s473 = sadd.s32 %s471, 1
              $region81: #{tpu_custom_call.1} parent=67 // loop_footer_branch
                %470 = sbr.rel target = $region77
              $region82: #{tpu_custom_call.1} parent=67 // loop_exit
                _
              %s519 = sshrl.u32 %s371, 1
              %s520 = sand.u32 %s371, 1
              %s521 = smul.u32 %s519, 2
              %s522 = smul.u32 48, %s521
              %s523 = scalar_lea.vmem %s379, %s522
              %s524 = smul.u32 48, %s521
              %s525 = scalar_lea.vmem %s364, %s524 [#allocation3]
              %s526 = smul.u32 %s367, %s520
              // While loop
              $region83: #{tpu_custom_call.1} parent=67 // loop_pre_header
                _
              $region84: #{tpu_custom_call.1} parent=67 // loop_header
                %s528 = sphi 0, %s530
                %p529 = scmp.ge.s32.totalorder %s528, %s526
                %s533 = sphi 0, %s555
                %s534 = sphi 0, %s551
                %s535 = sphi %s523, %s562
                %s536 = sphi %s525, %s563
              $region85: #{tpu_custom_call.1} parent=67 // loop_header_branch
                %532 = sbr.rel (%p529) target = $region89
              $region86: #{tpu_custom_call.1} parent=67 // loop_body
                %v537 = vld [vmem:[%s535] sm:$0xff]
                %538 = vst [vmem:[%s536] sm:$0xff] %v537
                %v539 = vld [vmem:[%s535 + $0x8] sm:$0xff]
                %540 = vst [vmem:[%s536 + $0x8] sm:$0xff] %v539
                %v541 = vld [vmem:[%s535 + $0x10] sm:$0xff]
                %542 = vst [vmem:[%s536 + $0x10] sm:$0xff] %v541
                %v543 = vld [vmem:[%s535 + $0x18] sm:$0xff]
                %544 = vst [vmem:[%s536 + $0x18] sm:$0xff] %v543
                %v545 = vld [vmem:[%s535 + $0x20] sm:$0xff]
                %546 = vst [vmem:[%s536 + $0x20] sm:$0xff] %v545
                %v547 = vld [vmem:[%s535 + $0x28] sm:$0xff]
                %548 = vst [vmem:[%s536 + $0x28] sm:$0xff] %v547
                %s549 = sadd.s32 1, %s534
                %p550 = scmp.ge.s32.totalorder %s549, %s520
                %s551 = scalar_select %p550, 0, %s549
                %s552 = sadd.s32 1, %s533
                %s553 = scalar_select %p550, %s552, %s533
                %p554 = scmp.ge.s32.totalorder %s553, %s367
                %s555 = scalar_select %p554, 0, %s553
                %s556 = smul.u32 %s555, 336
                %s557 = smul.u32 %s551, 48
                %s558 = sadd.s32 %s556, %s557
                %s559 = smul.u32 %s555, 96
                %s560 = smul.u32 %s551, 48
                %s561 = sadd.s32 %s559, %s560
                %s562 = scalar_lea.vmem %s523, %s558
                %s563 = scalar_lea.vmem %s525, %s561 [#allocation3]
              $region87: #{tpu_custom_call.1} parent=67 // loop_footer
                %s530 = sadd.s32 %s528, 1
              $region88: #{tpu_custom_call.1} parent=67 // loop_footer_branch
                %527 = sbr.rel target = $region84
              $region89: #{tpu_custom_call.1} parent=67 // loop_exit
                _
            $region68: #{tpu_custom_call.1} parent=63 // pred_fallthru
              _
            // Predicated region
            $region90: #{tpu_custom_call.1} parent=63 // pred_check
              _
            $region91: #{tpu_custom_call.1} parent=63 // pred_check_branch
              %565 = sbr.rel target = $region93
            $region92: #{tpu_custom_call.1} parent=63 // pred_region
              _
            $region93: #{tpu_custom_call.1} parent=63 // pred_fallthru
              _
          $region64: #{tpu_custom_call.1} parent=59 // pred_fallthru
            _
          %566 = vnop
        $region60: #{tpu_custom_call.1} parent=55 // pred_fallthru
          _
      $region56: #{tpu_custom_call.1} parent=5 // pred_fallthru
        _
      %p567 = scmp.le.s32.totalorder 1, %s18
      %p568 = scmp.lt.s32.totalorder %s18, 5
      %p569 = pnand %p567, %p568
      %p570 = pneg %p569
      // Predicated region
      $region94: #{tpu_custom_call.1} parent=5 // pred_check
        _
      $region95: #{tpu_custom_call.1} parent=5 // pred_check_branch
        %572 = sbr.rel (%p569) target = $region97
      $region96: #{tpu_custom_call.1} parent=5 // pred_region
        %s573 = ssub.s32 %s18, 1
        %s574 = sand.u32 %s45, 1
        %s575 = sand.u32 %s45, 1
        %s576 = smul.addr %s575, 768
        %s577 = scalar_lea.vmem [#allocation3], %s576
        // Predicated region
        $region98: #{tpu_custom_call.1} parent=96 // pred_check
          %p578 = pneg %p58
        $region99: #{tpu_custom_call.1} parent=96 // pred_check_branch
          %580 = sbr.rel (%p578) target = $region101
        $region100: #{tpu_custom_call.1} parent=96 // pred_region
          _
        $region101: #{tpu_custom_call.1} parent=96 // pred_fallthru
          _
        %s581 = sand.u32 %s45, 1
        %s582 = sand.u32 %s45, 1
        %s583 = smul.addr %s582, 768
        %s584 = scalar_lea.vmem [#allocation3], %s583
        %p585 = pneg %p58
        %p586 = pneg %p55
        %s587 = smul.u32 4, %s27
        %s588 = ssub.s32 1, %s587
        %s589 = smul.u32 32, %s588
        %p590 = scmp.lt.s32.totalorder %s587, 0
        %s591 = scalar_select %p590, %s587, 0
        %s592 = smul.addr %s591, 2
        %s593 = scalar_lea.vmem %s1, %s592
        %p594 = pneg %p84
        %p595 = pneg %p81
        %p596 = pneg %p105
        %p597 = pneg %p102
        %p598 = pneg %p126
        %p599 = pneg %p123
        %p600 = pneg %p147
        %p601 = pneg %p144
        %p602 = pneg %p168
        %p603 = pneg %p165
        %p604 = pneg %p189
        %p605 = pneg %p186
        %p606 = pneg %p210
        %p607 = pneg %p207
        %p608 = pneg %p231
        %p609 = pneg %p228
        %p610 = pneg %p252
        %p611 = pneg %p249
        %p612 = pneg %p273
        %p613 = pneg %p270
        %p614 = pneg %p299
        %p615 = pneg %p296
        %s616 = smul.u32 8, %s27
        %s617 = smul.u32 2, %s28
        %s618 = ssub.s32 2, %s616
        %s619 = smul.u32 128, %s618
        %s620 = ssub.s32 7, %s617
        %p621 = scmp.lt.s32.totalorder %s620, 2
        %s622 = scalar_select %p621, %s620, 2
        %s623 = smul.u32 %s619, %s622
        %s624 = smul.u32 %s623, 6
        %s625 = smul.u32 4, %s27
        %s626 = ssub.s32 1, %s625
        %s627 = smul.u32 32, %s626
        %p628 = scmp.lt.s32.totalorder %s625, 0
        %s629 = scalar_select %p628, %s625, 0
        %s630 = smul.addr %s629, 2
        %s631 = scalar_lea.vmem %s1, %s630
        %s632 = smul.u32 4, %s27
        %s633 = ssub.s32 1, %s632
        %s634 = smul.u32 32, %s633
        %s635 = smul.u32 4, %s27
        %s636 = ssub.s32 1, %s635
        %s637 = smul.u32 32, %s636
        %p638 = scmp.eq.s32.totalorder %s28, 0
        // Predicated region
        $region102: #{tpu_custom_call.1} parent=96 // pred_check
          %p639 = pneg %p638
        $region103: #{tpu_custom_call.1} parent=96 // pred_check_branch
          %641 = sbr.rel (%p639) target = $region105
        $region104: #{tpu_custom_call.1} parent=96 // pred_region
          %642 = vst [vmem:[#allocation2] sm:$0xff] 0.0
          %643 = vst [vmem:[#allocation2 + $0x8] sm:$0xff] 0.0
          %644 = vst [vmem:[#allocation2 + $0x10] sm:$0xff] 0.0
          %645 = vst [vmem:[#allocation2 + $0x18] sm:$0xff] 0.0
          %646 = vst [vmem:[#allocation2 + $0x20] sm:$0xff] 0.0
          %647 = vst [vmem:[#allocation2 + $0x28] sm:$0xff] 0.0
        $region105: #{tpu_custom_call.1} parent=96 // pred_fallthru
          _
        %v648 = vld [vmem:[%s577] sm:$0xff]
        %v649 = vld [vmem:[%s577 + $0x8] sm:$0xff]
        %v650 = vld [vmem:[%s577 + $0x10] sm:$0xff]
        %v651 = vld [vmem:[%s577 + $0x18] sm:$0xff]
        %v652 = vld [vmem:[%s577 + $0x20] sm:$0xff]
        %v653 = vld [vmem:[%s577 + $0x28] sm:$0xff]
        %v654 = vld [vmem:[%s577 + $0x30] sm:$0xff]
        %v655 = vld [vmem:[%s577 + $0x38] sm:$0xff]
        %v656 = vld [vmem:[%s577 + $0x40] sm:$0xff]
        %v657 = vld [vmem:[%s577 + $0x48] sm:$0xff]
        %v658 = vld [vmem:[%s577 + $0x50] sm:$0xff]
        %v659 = vld [vmem:[%s577 + $0x58] sm:$0xff]
        %v660 = vld [vmem:[%s577 + $0x60] sm:$0xff]
        %v661 = vld [vmem:[%s577 + $0x68] sm:$0xff]
        %v662 = vld [vmem:[%s577 + $0x70] sm:$0xff]
        %v663 = vld [vmem:[%s577 + $0x78] sm:$0xff]
        %v664 = vld [vmem:[%s577 + $0x80] sm:$0xff]
        %v665 = vld [vmem:[%s577 + $0x88] sm:$0xff]
        %v666 = vld [vmem:[%s577 + $0x90] sm:$0xff]
        %v667 = vld [vmem:[%s577 + $0x98] sm:$0xff]
        %v668 = vld [vmem:[%s577 + $0xa0] sm:$0xff]
        %v669 = vld [vmem:[%s577 + $0xa8] sm:$0xff]
        %v670 = vld [vmem:[%s577 + $0xb0] sm:$0xff]
        %v671 = vld [vmem:[%s577 + $0xb8] sm:$0xff]
        %v672 = vld [vmem:[%s577 + $0xc0] sm:$0xff]
        %v673 = vld [vmem:[%s577 + $0xc8] sm:$0xff]
        %v674 = vld [vmem:[%s577 + $0xd0] sm:$0xff]
        %v675 = vld [vmem:[%s577 + $0xd8] sm:$0xff]
        %v676 = vld [vmem:[%s577 + $0xe0] sm:$0xff]
        %v677 = vld [vmem:[%s577 + $0xe8] sm:$0xff]
        %v678 = vld [vmem:[%s577 + $0xf0] sm:$0xff]
        %v679 = vld [vmem:[%s577 + $0xf8] sm:$0xff]
        %v680 = vld [vmem:[%s577 + $0x100] sm:$0xff]
        %v681 = vld [vmem:[%s577 + $0x108] sm:$0xff]
        %v682 = vld [vmem:[%s577 + $0x110] sm:$0xff]
        %v683 = vld [vmem:[%s577 + $0x118] sm:$0xff]
        %v684 = vld [vmem:[%s577 + $0x120] sm:$0xff]
        %v685 = vld [vmem:[%s577 + $0x128] sm:$0xff]
        %v686 = vld [vmem:[%s577 + $0x130] sm:$0xff]
        %v687 = vld [vmem:[%s577 + $0x138] sm:$0xff]
        %v688 = vld [vmem:[%s577 + $0x140] sm:$0xff]
        %v689 = vld [vmem:[%s577 + $0x148] sm:$0xff]
        %v690 = vld [vmem:[%s577 + $0x150] sm:$0xff]
        %v691 = vld [vmem:[%s577 + $0x158] sm:$0xff]
        %v692 = vld [vmem:[%s577 + $0x160] sm:$0xff]
        %v693 = vld [vmem:[%s577 + $0x168] sm:$0xff]
        %v694 = vld [vmem:[%s577 + $0x170] sm:$0xff]
        %v695 = vld [vmem:[%s577 + $0x178] sm:$0xff]
        %v696 = vld [vmem:[%s577 + $0x180] sm:$0xff]
        %v697 = vld [vmem:[%s577 + $0x188] sm:$0xff]
        %v698 = vld [vmem:[%s577 + $0x190] sm:$0xff]
        %v699 = vld [vmem:[%s577 + $0x198] sm:$0xff]
        %v700 = vld [vmem:[%s577 + $0x1a0] sm:$0xff]
        %v701 = vld [vmem:[%s577 + $0x1a8] sm:$0xff]
        %v702 = vld [vmem:[%s577 + $0x1b0] sm:$0xff]
        %v703 = vld [vmem:[%s577 + $0x1b8] sm:$0xff]
        %v704 = vld [vmem:[%s577 + $0x1c0] sm:$0xff]
        %v705 = vld [vmem:[%s577 + $0x1c8] sm:$0xff]
        %v706 = vld [vmem:[%s577 + $0x1d0] sm:$0xff]
        %v707 = vld [vmem:[%s577 + $0x1d8] sm:$0xff]
        %v708 = vld [vmem:[%s577 + $0x1e0] sm:$0xff]
        %v709 = vld [vmem:[%s577 + $0x1e8] sm:$0xff]
        %v710 = vld [vmem:[%s577 + $0x1f0] sm:$0xff]
        %v711 = vld [vmem:[%s577 + $0x1f8] sm:$0xff]
        %v712 = vld [vmem:[%s577 + $0x200] sm:$0xff]
        %v713 = vld [vmem:[%s577 + $0x208] sm:$0xff]
        %v714 = vld [vmem:[%s577 + $0x210] sm:$0xff]
        %v715 = vld [vmem:[%s577 + $0x218] sm:$0xff]
        %v716 = vld [vmem:[%s577 + $0x220] sm:$0xff]
        %v717 = vld [vmem:[%s577 + $0x228] sm:$0xff]
        %v718 = vld [vmem:[%s577 + $0x230] sm:$0xff]
        %v719 = vld [vmem:[%s577 + $0x238] sm:$0xff]
        %v720 = vld [vmem:[%s577 + $0x240] sm:$0xff]
        %v721 = vld [vmem:[%s577 + $0x248] sm:$0xff]
        %v722 = vld [vmem:[%s577 + $0x250] sm:$0xff]
        %v723 = vld [vmem:[%s577 + $0x258] sm:$0xff]
        %v724 = vld [vmem:[%s577 + $0x260] sm:$0xff]
        %v725 = vld [vmem:[%s577 + $0x268] sm:$0xff]
        %v726 = vld [vmem:[%s577 + $0x270] sm:$0xff]
        %v727 = vld [vmem:[%s577 + $0x278] sm:$0xff]
        %v728 = vld [vmem:[%s577 + $0x280] sm:$0xff]
        %v729 = vld [vmem:[%s577 + $0x288] sm:$0xff]
        %v730 = vld [vmem:[%s577 + $0x290] sm:$0xff]
        %v731 = vld [vmem:[%s577 + $0x298] sm:$0xff]
        %v732 = vld [vmem:[%s577 + $0x2a0] sm:$0xff]
        %v733 = vld [vmem:[%s577 + $0x2a8] sm:$0xff]
        %v734 = vld [vmem:[%s577 + $0x2b0] sm:$0xff]
        %v735 = vld [vmem:[%s577 + $0x2b8] sm:$0xff]
        %v736 = vld [vmem:[%s577 + $0x2c0] sm:$0xff]
        %v737 = vld [vmem:[%s577 + $0x2c8] sm:$0xff]
        %v738 = vld [vmem:[%s577 + $0x2d0] sm:$0xff]
        %v739 = vld [vmem:[%s577 + $0x2d8] sm:$0xff]
        %v740 = vld [vmem:[%s577 + $0x2e0] sm:$0xff]
        %v741 = vld [vmem:[%s577 + $0x2e8] sm:$0xff]
        %v742 = vld [vmem:[%s577 + $0x2f0] sm:$0xff]
        %v743 = vld [vmem:[%s577 + $0x2f8] sm:$0xff]
        %s744 = smul.u32 %s28, 16
        %v745 = vlaneseq
        %v746 = vshrl.u32 %v745, 7
        %v747 = vadd.s32 %v746, 8
        %v748 = vstv %s744
        %v749 = vadd.s32 %v748, %v746
        %v750 = vadd.s32 %v748, %v747
        %vm751 = vcmp.lt.s32.totalorder %v749, 50
        %vm752 = vcmp.lt.s32.totalorder %v750, 50
        %v753 = vsel %vm751, %v648, 0.0
        %v754 = vsel %vm751, %v649, 0.0
        %v755 = vsel %vm751, %v650, 0.0
        %v756 = vsel %vm751, %v651, 0.0
        %v757 = vsel %vm751, %v652, 0.0
        %v758 = vsel %vm751, %v653, 0.0
        %v759 = vsel %vm752, %v654, 0.0
        %v760 = vsel %vm752, %v655, 0.0
        %v761 = vsel %vm752, %v656, 0.0
        %v762 = vsel %vm752, %v657, 0.0
        %v763 = vsel %vm752, %v658, 0.0
        %v764 = vsel %vm752, %v659, 0.0
        %v765 = vsel %vm751, %v660, 0.0
        %v766 = vsel %vm751, %v661, 0.0
        %v767 = vsel %vm751, %v662, 0.0
        %v768 = vsel %vm751, %v663, 0.0
        %v769 = vsel %vm751, %v664, 0.0
        %v770 = vsel %vm751, %v665, 0.0
        %v771 = vsel %vm752, %v666, 0.0
        %v772 = vsel %vm752, %v667, 0.0
        %v773 = vsel %vm752, %v668, 0.0
        %v774 = vsel %vm752, %v669, 0.0
        %v775 = vsel %vm752, %v670, 0.0
        %v776 = vsel %vm752, %v671, 0.0
        %v777 = vsel %vm751, %v672, 0.0
        %v778 = vsel %vm751, %v673, 0.0
        %v779 = vsel %vm751, %v674, 0.0
        %v780 = vsel %vm751, %v675, 0.0
        %v781 = vsel %vm751, %v676, 0.0
        %v782 = vsel %vm751, %v677, 0.0
        %v783 = vsel %vm752, %v678, 0.0
        %v784 = vsel %vm752, %v679, 0.0
        %v785 = vsel %vm752, %v680, 0.0
        %v786 = vsel %vm752, %v681, 0.0
        %v787 = vsel %vm752, %v682, 0.0
        %v788 = vsel %vm752, %v683, 0.0
        %v789 = vsel %vm751, %v684, 0.0
        %v790 = vsel %vm751, %v685, 0.0
        %v791 = vsel %vm751, %v686, 0.0
        %v792 = vsel %vm751, %v687, 0.0
        %v793 = vsel %vm751, %v688, 0.0
        %v794 = vsel %vm751, %v689, 0.0
        %v795 = vsel %vm752, %v690, 0.0
        %v796 = vsel %vm752, %v691, 0.0
        %v797 = vsel %vm752, %v692, 0.0
        %v798 = vsel %vm752, %v693, 0.0
        %v799 = vsel %vm752, %v694, 0.0
        %v800 = vsel %vm752, %v695, 0.0
        %v801 = vsel %vm751, %v696, 0.0
        %v802 = vsel %vm751, %v697, 0.0
        %v803 = vsel %vm751, %v698, 0.0
        %v804 = vsel %vm751, %v699, 0.0
        %v805 = vsel %vm751, %v700, 0.0
        %v806 = vsel %vm751, %v701, 0.0
        %v807 = vsel %vm752, %v702, 0.0
        %v808 = vsel %vm752, %v703, 0.0
        %v809 = vsel %vm752, %v704, 0.0
        %v810 = vsel %vm752, %v705, 0.0
        %v811 = vsel %vm752, %v706, 0.0
        %v812 = vsel %vm752, %v707, 0.0
        %v813 = vsel %vm751, %v708, 0.0
        %v814 = vsel %vm751, %v709, 0.0
        %v815 = vsel %vm751, %v710, 0.0
        %v816 = vsel %vm751, %v711, 0.0
        %v817 = vsel %vm751, %v712, 0.0
        %v818 = vsel %vm751, %v713, 0.0
        %v819 = vsel %vm752, %v714, 0.0
        %v820 = vsel %vm752, %v715, 0.0
        %v821 = vsel %vm752, %v716, 0.0
        %v822 = vsel %vm752, %v717, 0.0
        %v823 = vsel %vm752, %v718, 0.0
        %v824 = vsel %vm752, %v719, 0.0
        %v825 = vsel %vm751, %v720, 0.0
        %v826 = vsel %vm751, %v721, 0.0
        %v827 = vsel %vm751, %v722, 0.0
        %v828 = vsel %vm751, %v723, 0.0
        %v829 = vsel %vm751, %v724, 0.0
        %v830 = vsel %vm751, %v725, 0.0
        %v831 = vsel %vm752, %v726, 0.0
        %v832 = vsel %vm752, %v727, 0.0
        %v833 = vsel %vm752, %v728, 0.0
        %v834 = vsel %vm752, %v729, 0.0
        %v835 = vsel %vm752, %v730, 0.0
        %v836 = vsel %vm752, %v731, 0.0
        %v837 = vsel %vm751, %v732, 0.0
        %v838 = vsel %vm751, %v733, 0.0
        %v839 = vsel %vm751, %v734, 0.0
        %v840 = vsel %vm751, %v735, 0.0
        %v841 = vsel %vm751, %v736, 0.0
        %v842 = vsel %vm751, %v737, 0.0
        %v843 = vsel %vm752, %v738, 0.0
        %v844 = vsel %vm752, %v739, 0.0
        %v845 = vsel %vm752, %v740, 0.0
        %v846 = vsel %vm752, %v741, 0.0
        %v847 = vsel %vm752, %v742, 0.0
        %v848 = vsel %vm752, %v743, 0.0
        %v849 = vld [vmem:[#allocation2] sm:$0xff]
        %v850 = vld [vmem:[#allocation2 + $0x8] sm:$0xff]
        %v851 = vld [vmem:[#allocation2 + $0x10] sm:$0xff]
        %v852 = vld [vmem:[#allocation2 + $0x18] sm:$0xff]
        %v853 = vld [vmem:[#allocation2 + $0x20] sm:$0xff]
        %v854 = vld [vmem:[#allocation2 + $0x28] sm:$0xff]
        %v855 = vadd.f32 %v753, %v759
        %v856 = vrot.slane %v855, 4
        %v857 = vadd.f32 %v855, %v856
        %v858 = vrot.slane %v857, 2
        %v859 = vadd.f32 %v857, %v858
        %v860 = vrot.slane %v859, 1
        %v861 = vadd.f32 %v859, %v860
        %v862 = vadd.f32 %v754, %v760
        %v863 = vrot.slane %v862, 4
        %v864 = vadd.f32 %v862, %v863
        %v865 = vrot.slane %v864, 2
        %v866 = vadd.f32 %v864, %v865
        %v867 = vrot.slane %v866, 1
        %v868 = vadd.f32 %v866, %v867
        %v869 = vadd.f32 %v755, %v761
        %v870 = vrot.slane %v869, 4
        %v871 = vadd.f32 %v869, %v870
        %v872 = vrot.slane %v871, 2
        %v873 = vadd.f32 %v871, %v872
        %v874 = vrot.slane %v873, 1
        %v875 = vadd.f32 %v873, %v874
        %v876 = vadd.f32 %v756, %v762
        %v877 = vrot.slane %v876, 4
        %v878 = vadd.f32 %v876, %v877
        %v879 = vrot.slane %v878, 2
        %v880 = vadd.f32 %v878, %v879
        %v881 = vrot.slane %v880, 1
        %v882 = vadd.f32 %v880, %v881
        %v883 = vadd.f32 %v757, %v763
        %v884 = vrot.slane %v883, 4
        %v885 = vadd.f32 %v883, %v884
        %v886 = vrot.slane %v885, 2
        %v887 = vadd.f32 %v885, %v886
        %v888 = vrot.slane %v887, 1
        %v889 = vadd.f32 %v887, %v888
        %v890 = vadd.f32 %v758, %v764
        %v891 = vrot.slane %v890, 4
        %v892 = vadd.f32 %v890, %v891
        %v893 = vrot.slane %v892, 2
        %v894 = vadd.f32 %v892, %v893
        %v895 = vrot.slane %v894, 1
        %v896 = vadd.f32 %v894, %v895
        %v897 = vadd.f32 %v765, %v771
        %v898 = vrot.slane %v897, 4
        %v899 = vadd.f32 %v897, %v898
        %v900 = vrot.slane %v899, 2
        %v901 = vadd.f32 %v899, %v900
        %v902 = vrot.slane %v901, 1
        %v903 = vadd.f32 %v901, %v902
        %v904 = vadd.f32 %v766, %v772
        %v905 = vrot.slane %v904, 4
        %v906 = vadd.f32 %v904, %v905
        %v907 = vrot.slane %v906, 2
        %v908 = vadd.f32 %v906, %v907
        %v909 = vrot.slane %v908, 1
        %v910 = vadd.f32 %v908, %v909
        %v911 = vadd.f32 %v767, %v773
        %v912 = vrot.slane %v911, 4
        %v913 = vadd.f32 %v911, %v912
        %v914 = vrot.slane %v913, 2
        %v915 = vadd.f32 %v913, %v914
        %v916 = vrot.slane %v915, 1
        %v917 = vadd.f32 %v915, %v916
        %v918 = vadd.f32 %v768, %v774
        %v919 = vrot.slane %v918, 4
        %v920 = vadd.f32 %v918, %v919
        %v921 = vrot.slane %v920, 2
        %v922 = vadd.f32 %v920, %v921
        %v923 = vrot.slane %v922, 1
        %v924 = vadd.f32 %v922, %v923
        %v925 = vadd.f32 %v769, %v775
        %v926 = vrot.slane %v925, 4
        %v927 = vadd.f32 %v925, %v926
        %v928 = vrot.slane %v927, 2
        %v929 = vadd.f32 %v927, %v928
        %v930 = vrot.slane %v929, 1
        %v931 = vadd.f32 %v929, %v930
        %v932 = vadd.f32 %v770, %v776
        %v933 = vrot.slane %v932, 4
        %v934 = vadd.f32 %v932, %v933
        %v935 = vrot.slane %v934, 2
        %v936 = vadd.f32 %v934, %v935
        %v937 = vrot.slane %v936, 1
        %v938 = vadd.f32 %v936, %v937
        %v939 = vadd.f32 %v777, %v783
        %v940 = vrot.slane %v939, 4
        %v941 = vadd.f32 %v939, %v940
        %v942 = vrot.slane %v941, 2
        %v943 = vadd.f32 %v941, %v942
        %v944 = vrot.slane %v943, 1
        %v945 = vadd.f32 %v943, %v944
        %v946 = vadd.f32 %v778, %v784
        %v947 = vrot.slane %v946, 4
        %v948 = vadd.f32 %v946, %v947
        %v949 = vrot.slane %v948, 2
        %v950 = vadd.f32 %v948, %v949
        %v951 = vrot.slane %v950, 1
        %v952 = vadd.f32 %v950, %v951
        %v953 = vadd.f32 %v779, %v785
        %v954 = vrot.slane %v953, 4
        %v955 = vadd.f32 %v953, %v954
        %v956 = vrot.slane %v955, 2
        %v957 = vadd.f32 %v955, %v956
        %v958 = vrot.slane %v957, 1
        %v959 = vadd.f32 %v957, %v958
        %v960 = vadd.f32 %v780, %v786
        %v961 = vrot.slane %v960, 4
        %v962 = vadd.f32 %v960, %v961
        %v963 = vrot.slane %v962, 2
        %v964 = vadd.f32 %v962, %v963
        %v965 = vrot.slane %v964, 1
        %v966 = vadd.f32 %v964, %v965
        %v967 = vadd.f32 %v781, %v787
        %v968 = vrot.slane %v967, 4
        %v969 = vadd.f32 %v967, %v968
        %v970 = vrot.slane %v969, 2
        %v971 = vadd.f32 %v969, %v970
        %v972 = vrot.slane %v971, 1
        %v973 = vadd.f32 %v971, %v972
        %v974 = vadd.f32 %v782, %v788
        %v975 = vrot.slane %v974, 4
        %v976 = vadd.f32 %v974, %v975
        %v977 = vrot.slane %v976, 2
        %v978 = vadd.f32 %v976, %v977
        %v979 = vrot.slane %v978, 1
        %v980 = vadd.f32 %v978, %v979
        %v981 = vadd.f32 %v789, %v795
        %v982 = vrot.slane %v981, 4
        %v983 = vadd.f32 %v981, %v982
        %v984 = vrot.slane %v983, 2
        %v985 = vadd.f32 %v983, %v984
        %v986 = vrot.slane %v985, 1
        %v987 = vadd.f32 %v985, %v986
        %v988 = vadd.f32 %v790, %v796
        %v989 = vrot.slane %v988, 4
        %v990 = vadd.f32 %v988, %v989
        %v991 = vrot.slane %v990, 2
        %v992 = vadd.f32 %v990, %v991
        %v993 = vrot.slane %v992, 1
        %v994 = vadd.f32 %v992, %v993
        %v995 = vadd.f32 %v791, %v797
        %v996 = vrot.slane %v995, 4
        %v997 = vadd.f32 %v995, %v996
        %v998 = vrot.slane %v997, 2
        %v999 = vadd.f32 %v997, %v998
        %v1000 = vrot.slane %v999, 1
        %v1001 = vadd.f32 %v999, %v1000
        %v1002 = vadd.f32 %v792, %v798
        %v1003 = vrot.slane %v1002, 4
        %v1004 = vadd.f32 %v1002, %v1003
        %v1005 = vrot.slane %v1004, 2
        %v1006 = vadd.f32 %v1004, %v1005
        %v1007 = vrot.slane %v1006, 1
        %v1008 = vadd.f32 %v1006, %v1007
        %v1009 = vadd.f32 %v793, %v799
        %v1010 = vrot.slane %v1009, 4
        %v1011 = vadd.f32 %v1009, %v1010
        %v1012 = vrot.slane %v1011, 2
        %v1013 = vadd.f32 %v1011, %v1012
        %v1014 = vrot.slane %v1013, 1
        %v1015 = vadd.f32 %v1013, %v1014
        %v1016 = vadd.f32 %v794, %v800
        %v1017 = vrot.slane %v1016, 4
        %v1018 = vadd.f32 %v1016, %v1017
        %v1019 = vrot.slane %v1018, 2
        %v1020 = vadd.f32 %v1018, %v1019
        %v1021 = vrot.slane %v1020, 1
        %v1022 = vadd.f32 %v1020, %v1021
        %v1023 = vadd.f32 %v801, %v807
        %v1024 = vrot.slane %v1023, 4
        %v1025 = vadd.f32 %v1023, %v1024
        %v1026 = vrot.slane %v1025, 2
        %v1027 = vadd.f32 %v1025, %v1026
        %v1028 = vrot.slane %v1027, 1
        %v1029 = vadd.f32 %v1027, %v1028
        %v1030 = vadd.f32 %v802, %v808
        %v1031 = vrot.slane %v1030, 4
        %v1032 = vadd.f32 %v1030, %v1031
        %v1033 = vrot.slane %v1032, 2
        %v1034 = vadd.f32 %v1032, %v1033
        %v1035 = vrot.slane %v1034, 1
        %v1036 = vadd.f32 %v1034, %v1035
        %v1037 = vadd.f32 %v803, %v809
        %v1038 = vrot.slane %v1037, 4
        %v1039 = vadd.f32 %v1037, %v1038
        %v1040 = vrot.slane %v1039, 2
        %v1041 = vadd.f32 %v1039, %v1040
        %v1042 = vrot.slane %v1041, 1
        %v1043 = vadd.f32 %v1041, %v1042
        %v1044 = vadd.f32 %v804, %v810
        %v1045 = vrot.slane %v1044, 4
        %v1046 = vadd.f32 %v1044, %v1045
        %v1047 = vrot.slane %v1046, 2
        %v1048 = vadd.f32 %v1046, %v1047
        %v1049 = vrot.slane %v1048, 1
        %v1050 = vadd.f32 %v1048, %v1049
        %v1051 = vadd.f32 %v805, %v811
        %v1052 = vrot.slane %v1051, 4
        %v1053 = vadd.f32 %v1051, %v1052
        %v1054 = vrot.slane %v1053, 2
        %v1055 = vadd.f32 %v1053, %v1054
        %v1056 = vrot.slane %v1055, 1
        %v1057 = vadd.f32 %v1055, %v1056
        %v1058 = vadd.f32 %v806, %v812
        %v1059 = vrot.slane %v1058, 4
        %v1060 = vadd.f32 %v1058, %v1059
        %v1061 = vrot.slane %v1060, 2
        %v1062 = vadd.f32 %v1060, %v1061
        %v1063 = vrot.slane %v1062, 1
        %v1064 = vadd.f32 %v1062, %v1063
        %v1065 = vadd.f32 %v813, %v819
        %v1066 = vrot.slane %v1065, 4
        %v1067 = vadd.f32 %v1065, %v1066
        %v1068 = vrot.slane %v1067, 2
        %v1069 = vadd.f32 %v1067, %v1068
        %v1070 = vrot.slane %v1069, 1
        %v1071 = vadd.f32 %v1069, %v1070
        %v1072 = vadd.f32 %v814, %v820
        %v1073 = vrot.slane %v1072, 4
        %v1074 = vadd.f32 %v1072, %v1073
        %v1075 = vrot.slane %v1074, 2
        %v1076 = vadd.f32 %v1074, %v1075
        %v1077 = vrot.slane %v1076, 1
        %v1078 = vadd.f32 %v1076, %v1077
        %v1079 = vadd.f32 %v815, %v821
        %v1080 = vrot.slane %v1079, 4
        %v1081 = vadd.f32 %v1079, %v1080
        %v1082 = vrot.slane %v1081, 2
        %v1083 = vadd.f32 %v1081, %v1082
        %v1084 = vrot.slane %v1083, 1
        %v1085 = vadd.f32 %v1083, %v1084
        %v1086 = vadd.f32 %v816, %v822
        %v1087 = vrot.slane %v1086, 4
        %v1088 = vadd.f32 %v1086, %v1087
        %v1089 = vrot.slane %v1088, 2
        %v1090 = vadd.f32 %v1088, %v1089
        %v1091 = vrot.slane %v1090, 1
        %v1092 = vadd.f32 %v1090, %v1091
        %v1093 = vadd.f32 %v817, %v823
        %v1094 = vrot.slane %v1093, 4
        %v1095 = vadd.f32 %v1093, %v1094
        %v1096 = vrot.slane %v1095, 2
        %v1097 = vadd.f32 %v1095, %v1096
        %v1098 = vrot.slane %v1097, 1
        %v1099 = vadd.f32 %v1097, %v1098
        %v1100 = vadd.f32 %v818, %v824
        %v1101 = vrot.slane %v1100, 4
        %v1102 = vadd.f32 %v1100, %v1101
        %v1103 = vrot.slane %v1102, 2
        %v1104 = vadd.f32 %v1102, %v1103
        %v1105 = vrot.slane %v1104, 1
        %v1106 = vadd.f32 %v1104, %v1105
        %v1107 = vadd.f32 %v825, %v831
        %v1108 = vrot.slane %v1107, 4
        %v1109 = vadd.f32 %v1107, %v1108
        %v1110 = vrot.slane %v1109, 2
        %v1111 = vadd.f32 %v1109, %v1110
        %v1112 = vrot.slane %v1111, 1
        %v1113 = vadd.f32 %v1111, %v1112
        %v1114 = vadd.f32 %v826, %v832
        %v1115 = vrot.slane %v1114, 4
        %v1116 = vadd.f32 %v1114, %v1115
        %v1117 = vrot.slane %v1116, 2
        %v1118 = vadd.f32 %v1116, %v1117
        %v1119 = vrot.slane %v1118, 1
        %v1120 = vadd.f32 %v1118, %v1119
        %v1121 = vadd.f32 %v827, %v833
        %v1122 = vrot.slane %v1121, 4
        %v1123 = vadd.f32 %v1121, %v1122
        %v1124 = vrot.slane %v1123, 2
        %v1125 = vadd.f32 %v1123, %v1124
        %v1126 = vrot.slane %v1125, 1
        %v1127 = vadd.f32 %v1125, %v1126
        %v1128 = vadd.f32 %v828, %v834
        %v1129 = vrot.slane %v1128, 4
        %v1130 = vadd.f32 %v1128, %v1129
        %v1131 = vrot.slane %v1130, 2
        %v1132 = vadd.f32 %v1130, %v1131
        %v1133 = vrot.slane %v1132, 1
        %v1134 = vadd.f32 %v1132, %v1133
        %v1135 = vadd.f32 %v829, %v835
        %v1136 = vrot.slane %v1135, 4
        %v1137 = vadd.f32 %v1135, %v1136
        %v1138 = vrot.slane %v1137, 2
        %v1139 = vadd.f32 %v1137, %v1138
        %v1140 = vrot.slane %v1139, 1
        %v1141 = vadd.f32 %v1139, %v1140
        %v1142 = vadd.f32 %v830, %v836
        %v1143 = vrot.slane %v1142, 4
        %v1144 = vadd.f32 %v1142, %v1143
        %v1145 = vrot.slane %v1144, 2
        %v1146 = vadd.f32 %v1144, %v1145
        %v1147 = vrot.slane %v1146, 1
        %v1148 = vadd.f32 %v1146, %v1147
        %v1149 = vadd.f32 %v837, %v843
        %v1150 = vrot.slane %v1149, 4
        %v1151 = vadd.f32 %v1149, %v1150
        %v1152 = vrot.slane %v1151, 2
        %v1153 = vadd.f32 %v1151, %v1152
        %v1154 = vrot.slane %v1153, 1
        %v1155 = vadd.f32 %v1153, %v1154
        %v1156 = vadd.f32 %v838, %v844
        %v1157 = vrot.slane %v1156, 4
        %v1158 = vadd.f32 %v1156, %v1157
        %v1159 = vrot.slane %v1158, 2
        %v1160 = vadd.f32 %v1158, %v1159
        %v1161 = vrot.slane %v1160, 1
        %v1162 = vadd.f32 %v1160, %v1161
        %v1163 = vadd.f32 %v839, %v845
        %v1164 = vrot.slane %v1163, 4
        %v1165 = vadd.f32 %v1163, %v1164
        %v1166 = vrot.slane %v1165, 2
        %v1167 = vadd.f32 %v1165, %v1166
        %v1168 = vrot.slane %v1167, 1
        %v1169 = vadd.f32 %v1167, %v1168
        %v1170 = vadd.f32 %v840, %v846
        %v1171 = vrot.slane %v1170, 4
        %v1172 = vadd.f32 %v1170, %v1171
        %v1173 = vrot.slane %v1172, 2
        %v1174 = vadd.f32 %v1172, %v1173
        %v1175 = vrot.slane %v1174, 1
        %v1176 = vadd.f32 %v1174, %v1175
        %v1177 = vadd.f32 %v841, %v847
        %v1178 = vrot.slane %v1177, 4
        %v1179 = vadd.f32 %v1177, %v1178
        %v1180 = vrot.slane %v1179, 2
        %v1181 = vadd.f32 %v1179, %v1180
        %v1182 = vrot.slane %v1181, 1
        %v1183 = vadd.f32 %v1181, %v1182
        %v1184 = vadd.f32 %v842, %v848
        %v1185 = vrot.slane %v1184, 4
        %v1186 = vadd.f32 %v1184, %v1185
        %v1187 = vrot.slane %v1186, 2
        %v1188 = vadd.f32 %v1186, %v1187
        %v1189 = vrot.slane %v1188, 1
        %v1190 = vadd.f32 %v1188, %v1189
        %vm1239 = vcmask 1041409
        %v1240 = vsel %vm1239, %v903, %v861
        %vm1241 = vcmask 1042434
        %v1242 = vsel %vm1241, %v945, %v1240
        %vm1243 = vcmask 1043459
        %v1244 = vsel %vm1243, %v987, %v1242
        %vm1245 = vcmask 1044484
        %v1246 = vsel %vm1245, %v1029, %v1244
        %vm1247 = vcmask 1045509
        %v1248 = vsel %vm1247, %v1071, %v1246
        %vm1249 = vcmask 1046534
        %v1250 = vsel %vm1249, %v1113, %v1248
        %vm1251 = vcmask 1047559
        %v1252 = vsel %vm1251, %v1155, %v1250
        %v1253 = vsel %vm1239, %v910, %v868
        %v1254 = vsel %vm1241, %v952, %v1253
        %v1255 = vsel %vm1243, %v994, %v1254
        %v1256 = vsel %vm1245, %v1036, %v1255
        %v1257 = vsel %vm1247, %v1078, %v1256
        %v1258 = vsel %vm1249, %v1120, %v1257
        %v1259 = vsel %vm1251, %v1162, %v1258
        %v1260 = vsel %vm1239, %v917, %v875
        %v1261 = vsel %vm1241, %v959, %v1260
        %v1262 = vsel %vm1243, %v1001, %v1261
        %v1263 = vsel %vm1245, %v1043, %v1262
        %v1264 = vsel %vm1247, %v1085, %v1263
        %v1265 = vsel %vm1249, %v1127, %v1264
        %v1266 = vsel %vm1251, %v1169, %v1265
        %v1267 = vsel %vm1239, %v924, %v882
        %v1268 = vsel %vm1241, %v966, %v1267
        %v1269 = vsel %vm1243, %v1008, %v1268
        %v1270 = vsel %vm1245, %v1050, %v1269
        %v1271 = vsel %vm1247, %v1092, %v1270
        %v1272 = vsel %vm1249, %v1134, %v1271
        %v1273 = vsel %vm1251, %v1176, %v1272
        %v1274 = vsel %vm1239, %v931, %v889
        %v1275 = vsel %vm1241, %v973, %v1274
        %v1276 = vsel %vm1243, %v1015, %v1275
        %v1277 = vsel %vm1245, %v1057, %v1276
        %v1278 = vsel %vm1247, %v1099, %v1277
        %v1279 = vsel %vm1249, %v1141, %v1278
        %v1280 = vsel %vm1251, %v1183, %v1279
        %v1281 = vsel %vm1239, %v938, %v896
        %v1282 = vsel %vm1241, %v980, %v1281
        %v1283 = vsel %vm1243, %v1022, %v1282
        %v1284 = vsel %vm1245, %v1064, %v1283
        %v1285 = vsel %vm1247, %v1106, %v1284
        %v1286 = vsel %vm1249, %v1148, %v1285
        %v1287 = vsel %vm1251, %v1190, %v1286
        %v1294 = vadd.f32 %v849, %v1252
        %v1295 = vadd.f32 %v850, %v1259
        %v1296 = vadd.f32 %v851, %v1266
        %v1297 = vadd.f32 %v852, %v1273
        %v1298 = vadd.f32 %v853, %v1280
        %v1299 = vadd.f32 %v854, %v1287
        %1300 = vst [vmem:[#allocation2] sm:$0xff] %v1294
        %1301 = vst [vmem:[#allocation2 + $0x8] sm:$0xff] %v1295
        %1302 = vst [vmem:[#allocation2 + $0x10] sm:$0xff] %v1296
        %1303 = vst [vmem:[#allocation2 + $0x18] sm:$0xff] %v1297
        %1304 = vst [vmem:[#allocation2 + $0x20] sm:$0xff] %v1298
        %1305 = vst [vmem:[#allocation2 + $0x28] sm:$0xff] %v1299
        %p1306 = scmp.eq.s32.totalorder %s28, 3
        // Predicated region
        $region106: #{tpu_custom_call.1} parent=96 // pred_check
          %p1307 = pneg %p1306
        $region107: #{tpu_custom_call.1} parent=96 // pred_check_branch
          %1309 = sbr.rel (%p1307) target = $region109
        $region108: #{tpu_custom_call.1} parent=96 // pred_region
          %v1310 = vld [vmem:[#allocation2] sm:$0xff]
          %v1311 = vld [vmem:[#allocation2 + $0x8] sm:$0xff]
          %v1312 = vld [vmem:[#allocation2 + $0x10] sm:$0xff]
          %v1313 = vld [vmem:[#allocation2 + $0x18] sm:$0xff]
          %v1314 = vld [vmem:[#allocation2 + $0x20] sm:$0xff]
          %v1315 = vld [vmem:[#allocation2 + $0x28] sm:$0xff]
          %v1316 = vmul.f32 %v1310, 0.02
          %v1317 = vmul.f32 %v1311, 0.02
          %v1318 = vmul.f32 %v1312, 0.02
          %v1319 = vmul.f32 %v1313, 0.02
          %v1320 = vmul.f32 %v1314, 0.02
          %v1321 = vmul.f32 %v1315, 0.02
          %v1322 = vld [vmem:[%s2] sm:$0xff]
          %v1323 = vld [vmem:[%s2 + $0x8] sm:$0xff]
          %v1324 = vld [vmem:[%s2 + $0x10] sm:$0xff]
          %v1325 = vld [vmem:[%s2 + $0x18] sm:$0xff]
          %v1326 = vld [vmem:[%s2 + $0x20] sm:$0xff]
          %v1327 = vld [vmem:[%s2 + $0x28] sm:$0xff]
          %v1328 = vld [vmem:[%s2 + $0x30] sm:$0xff]
          %v1329 = vld [vmem:[%s2 + $0x38] sm:$0xff]
          %v1330 = vld [vmem:[%s2 + $0x40] sm:$0xff]
          %v1331 = vld [vmem:[%s2 + $0x48] sm:$0xff]
          %v1332 = vld [vmem:[%s2 + $0x50] sm:$0xff]
          %v1333 = vld [vmem:[%s2 + $0x58] sm:$0xff]
          %v1334 = vld [vmem:[%s2 + $0x60] sm:$0xff]
          %v1335 = vld [vmem:[%s2 + $0x68] sm:$0xff]
          %v1336 = vld [vmem:[%s2 + $0x70] sm:$0xff]
          %v1337 = vld [vmem:[%s2 + $0x78] sm:$0xff]
          %v1338 = vld [vmem:[%s2 + $0x80] sm:$0xff]
          %v1339 = vld [vmem:[%s2 + $0x88] sm:$0xff]
          %v1340 = vld [vmem:[%s2 + $0x90] sm:$0xff]
          %v1341 = vld [vmem:[%s2 + $0x98] sm:$0xff]
          %v1342 = vld [vmem:[%s2 + $0xa0] sm:$0xff]
          %v1343 = vld [vmem:[%s2 + $0xa8] sm:$0xff]
          %v1344 = vld [vmem:[%s2 + $0xb0] sm:$0xff]
          %v1345 = vld [vmem:[%s2 + $0xb8] sm:$0xff]
          %v1346 = vld [vmem:[%s2 + $0xc0] sm:$0xff]
          %v1347 = vld [vmem:[%s2 + $0xc8] sm:$0xff]
          %v1348 = vld [vmem:[%s2 + $0xd0] sm:$0xff]
          %v1349 = vld [vmem:[%s2 + $0xd8] sm:$0xff]
          %v1350 = vld [vmem:[%s2 + $0xe0] sm:$0xff]
          %v1351 = vld [vmem:[%s2 + $0xe8] sm:$0xff]
          %v1352 = vld [vmem:[%s2 + $0xf0] sm:$0xff]
          %v1353 = vld [vmem:[%s2 + $0xf8] sm:$0xff]
          %v1354 = vld [vmem:[%s2 + $0x100] sm:$0xff]
          %v1355 = vld [vmem:[%s2 + $0x108] sm:$0xff]
          %v1356 = vld [vmem:[%s2 + $0x110] sm:$0xff]
          %v1357 = vld [vmem:[%s2 + $0x118] sm:$0xff]
          %v1358 = vld [vmem:[%s2 + $0x120] sm:$0xff]
          %v1359 = vld [vmem:[%s2 + $0x128] sm:$0xff]
          %v1360 = vld [vmem:[%s2 + $0x130] sm:$0xff]
          %v1361 = vld [vmem:[%s2 + $0x138] sm:$0xff]
          %v1362 = vld [vmem:[%s2 + $0x140] sm:$0xff]
          %v1363 = vld [vmem:[%s2 + $0x148] sm:$0xff]
          %v1364 = vld [vmem:[%s2 + $0x150] sm:$0xff]
          %v1365 = vld [vmem:[%s2 + $0x158] sm:$0xff]
          %v1366 = vld [vmem:[%s2 + $0x160] sm:$0xff]
          %v1367 = vld [vmem:[%s2 + $0x168] sm:$0xff]
          %v1368 = vld [vmem:[%s2 + $0x170] sm:$0xff]
          %v1369 = vld [vmem:[%s2 + $0x178] sm:$0xff]
          %v1370 = vld [vmem:[%s2 + $0x180] sm:$0xff]
          %v1371 = vld [vmem:[%s2 + $0x188] sm:$0xff]
          %v1372 = vld [vmem:[%s2 + $0x190] sm:$0xff]
          %v1373 = vld [vmem:[%s2 + $0x198] sm:$0xff]
          %v1374 = vld [vmem:[%s2 + $0x1a0] sm:$0xff]
          %v1375 = vld [vmem:[%s2 + $0x1a8] sm:$0xff]
          %v1376 = vld [vmem:[%s2 + $0x1b0] sm:$0xff]
          %v1377 = vld [vmem:[%s2 + $0x1b8] sm:$0xff]
          %v1378 = vld [vmem:[%s2 + $0x1c0] sm:$0xff]
          %v1379 = vld [vmem:[%s2 + $0x1c8] sm:$0xff]
          %v1380 = vld [vmem:[%s2 + $0x1d0] sm:$0xff]
          %v1381 = vld [vmem:[%s2 + $0x1d8] sm:$0xff]
          %v1382 = vld [vmem:[%s2 + $0x1e0] sm:$0xff]
          %v1383 = vld [vmem:[%s2 + $0x1e8] sm:$0xff]
          %v1384 = vld [vmem:[%s2 + $0x1f0] sm:$0xff]
          %v1385 = vld [vmem:[%s2 + $0x1f8] sm:$0xff]
          %v1386 = vld [vmem:[%s2 + $0x200] sm:$0xff]
          %v1387 = vld [vmem:[%s2 + $0x208] sm:$0xff]
          %v1388 = vld [vmem:[%s2 + $0x210] sm:$0xff]
          %v1389 = vld [vmem:[%s2 + $0x218] sm:$0xff]
          %v1390 = vld [vmem:[%s2 + $0x220] sm:$0xff]
          %v1391 = vld [vmem:[%s2 + $0x228] sm:$0xff]
          %v1392 = vld [vmem:[%s2 + $0x230] sm:$0xff]
          %v1393 = vld [vmem:[%s2 + $0x238] sm:$0xff]
          %v1394 = vld [vmem:[%s2 + $0x240] sm:$0xff]
          %v1395 = vld [vmem:[%s2 + $0x248] sm:$0xff]
          %v1396 = vld [vmem:[%s2 + $0x250] sm:$0xff]
          %v1397 = vld [vmem:[%s2 + $0x258] sm:$0xff]
          %v1398 = vld [vmem:[%s2 + $0x260] sm:$0xff]
          %v1399 = vld [vmem:[%s2 + $0x268] sm:$0xff]
          %v1400 = vld [vmem:[%s2 + $0x270] sm:$0xff]
          %v1401 = vld [vmem:[%s2 + $0x278] sm:$0xff]
          %v1402 = vld [vmem:[%s2 + $0x280] sm:$0xff]
          %v1403 = vld [vmem:[%s2 + $0x288] sm:$0xff]
          %v1404 = vld [vmem:[%s2 + $0x290] sm:$0xff]
          %v1405 = vld [vmem:[%s2 + $0x298] sm:$0xff]
          %v1406 = vld [vmem:[%s2 + $0x2a0] sm:$0xff]
          %v1407 = vld [vmem:[%s2 + $0x2a8] sm:$0xff]
          %v1408 = vld [vmem:[%s2 + $0x2b0] sm:$0xff]
          %v1409 = vld [vmem:[%s2 + $0x2b8] sm:$0xff]
          %v1410 = vld [vmem:[%s2 + $0x2c0] sm:$0xff]
          %v1411 = vld [vmem:[%s2 + $0x2c8] sm:$0xff]
          %v1412 = vld [vmem:[%s2 + $0x2d0] sm:$0xff]
          %v1413 = vld [vmem:[%s2 + $0x2d8] sm:$0xff]
          %v1414 = vld [vmem:[%s2 + $0x2e0] sm:$0xff]
          %v1415 = vld [vmem:[%s2 + $0x2e8] sm:$0xff]
          %v1416 = vld [vmem:[%s2 + $0x2f0] sm:$0xff]
          %v1417 = vld [vmem:[%s2 + $0x2f8] sm:$0xff]
          %v1418 = vld [vmem:[%s3] sm:$0x1]
          %v1420 = vlaneseq
          %v1421 = vshrl.u32 %v1420, 7
          %v1422 = vsub.s32 0, %v1421
          %v1423 = vrot.slane %v1418, %v1422
          %1425 = vmatprep.subr.mxu0 0.0
          %1426 = vmatpush1.msra.mxu0 %v1322
          %1427 = vmatprep.subr.mxu0 0.0
          %1428 = vmatpush1.msra.mxu0 %v1323
          %1429 = vmatprep.subr.mxu0 0.0
          %1430 = vmatpush1.msra.mxu0 %v1324
          %1431 = vmatprep.subr.mxu0 0.0
          %1432 = vmatpush1.msra.mxu0 %v1325
          %1433 = vmatprep.subr.mxu0 0.0
          %1434 = vmatpush1.msra.mxu0 %v1326
          %1435 = vmatprep.subr.mxu0 0.0
          %1436 = vmatpush1.msra.mxu0 %v1327
          %1437 = vmatprep.subr.mxu0 0.0
          %1438 = vmatpush1.msra.mxu0 %v1328
          %1439 = vmatprep.subr.mxu0 0.0
          %1440 = vmatpush1.msra.mxu0 %v1329
          %1441 = vmatprep.subr.mxu0 0.0
          %1442 = vmatpush1.msra.mxu0 %v1330
          %1443 = vmatprep.subr.mxu0 0.0
          %1444 = vmatpush1.msra.mxu0 %v1331
          %1445 = vmatprep.subr.mxu0 0.0
          %1446 = vmatpush1.msra.mxu0 %v1332
          %1447 = vmatprep.subr.mxu0 0.0
          %1448 = vmatpush1.msra.mxu0 %v1333
          %1449 = vmatprep.subr.mxu0 0.0
          %1450 = vmatpush1.msra.mxu0 %v1334
          %1451 = vmatprep.subr.mxu0 0.0
          %1452 = vmatpush1.msra.mxu0 %v1335
          %1453 = vmatprep.subr.mxu0 0.0
          %1454 = vmatpush1.msra.mxu0 %v1336
          %1455 = vmatprep.subr.mxu0 0.0
          %1456 = vmatpush1.msra.mxu0 %v1337
          %1457 = vmatprep.subr.mxu0 0.0
          %1458 = vmatpush1.msra.mxu0 %v1338
          %1459 = vmatprep.subr.mxu0 0.0
          %1460 = vmatpush1.msra.mxu0 %v1339
          %1461 = vmatprep.subr.mxu0 0.0
          %1462 = vmatpush1.msra.mxu0 %v1340
          %1463 = vmatprep.subr.mxu0 0.0
          %1464 = vmatpush1.msra.mxu0 %v1341
          %1465 = vmatprep.subr.mxu0 0.0
          %1466 = vmatpush1.msra.mxu0 %v1342
          %1467 = vmatprep.subr.mxu0 0.0
          %1468 = vmatpush1.msra.mxu0 %v1343
          %1469 = vmatprep.subr.mxu0 0.0
          %1470 = vmatpush1.msra.mxu0 %v1344
          %1471 = vmatprep.subr.mxu0 0.0
          %1472 = vmatpush1.msra.mxu0 %v1345
          %1473 = vmatprep.subr.mxu0 0.0
          %1474 = vmatpush1.msra.mxu0 %v1346
          %1475 = vmatprep.subr.mxu0 0.0
          %1476 = vmatpush1.msra.mxu0 %v1347
          %1477 = vmatprep.subr.mxu0 0.0
          %1478 = vmatpush1.msra.mxu0 %v1348
          %1479 = vmatprep.subr.mxu0 0.0
          %1480 = vmatpush1.msra.mxu0 %v1349
          %1481 = vmatprep.subr.mxu0 0.0
          %1482 = vmatpush1.msra.mxu0 %v1350
          %1483 = vmatprep.subr.mxu0 0.0
          %1484 = vmatpush1.msra.mxu0 %v1351
          %1485 = vmatprep.subr.mxu0 0.0
          %1486 = vmatpush1.msra.mxu0 %v1352
          %1487 = vmatprep.subr.mxu0 0.0
          %1488 = vmatpush1.msra.mxu0 %v1353
          %1489 = vmatprep.mubr.f32.mxu0 %v1317
          %1490 = vmatmul.mubr.f32.gmra.mrb[0].mxu0 %v1316
          %v1491 = vpop.f32.mrb[0].mxu0
          %v1492 = vadd.f32 %v1423, %v1491
          %v1493 = vpop.f32.mrb[0].mxu0
          %1494 = vdwg.mxu0
          %1495 = vmatprep.subr.mxu0 0.0
          %1496 = vmatpush1.msra.mxu0 %v1354
          %1497 = vmatprep.subr.mxu0 0.0
          %1498 = vmatpush1.msra.mxu0 %v1355
          %1499 = vmatprep.subr.mxu0 0.0
          %1500 = vmatpush1.msra.mxu0 %v1356
          %1501 = vmatprep.subr.mxu0 0.0
          %1502 = vmatpush1.msra.mxu0 %v1357
          %1503 = vmatprep.subr.mxu0 0.0
          %1504 = vmatpush1.msra.mxu0 %v1358
          %1505 = vmatprep.subr.mxu0 0.0
          %1506 = vmatpush1.msra.mxu0 %v1359
          %1507 = vmatprep.subr.mxu0 0.0
          %1508 = vmatpush1.msra.mxu0 %v1360
          %1509 = vmatprep.subr.mxu0 0.0
          %1510 = vmatpush1.msra.mxu0 %v1361
          %1511 = vmatprep.subr.mxu0 0.0
          %1512 = vmatpush1.msra.mxu0 %v1362
          %1513 = vmatprep.subr.mxu0 0.0
          %1514 = vmatpush1.msra.mxu0 %v1363
          %1515 = vmatprep.subr.mxu0 0.0
          %1516 = vmatpush1.msra.mxu0 %v1364
          %1517 = vmatprep.subr.mxu0 0.0
          %1518 = vmatpush1.msra.mxu0 %v1365
          %1519 = vmatprep.subr.mxu0 0.0
          %1520 = vmatpush1.msra.mxu0 %v1366
          %1521 = vmatprep.subr.mxu0 0.0
          %1522 = vmatpush1.msra.mxu0 %v1367
          %1523 = vmatprep.subr.mxu0 0.0
          %1524 = vmatpush1.msra.mxu0 %v1368
          %1525 = vmatprep.subr.mxu0 0.0
          %1526 = vmatpush1.msra.mxu0 %v1369
          %1527 = vmatprep.subr.mxu0 0.0
          %1528 = vmatpush1.msra.mxu0 %v1370
          %1529 = vmatprep.subr.mxu0 0.0
          %1530 = vmatpush1.msra.mxu0 %v1371
          %1531 = vmatprep.subr.mxu0 0.0
          %1532 = vmatpush1.msra.mxu0 %v1372
          %1533 = vmatprep.subr.mxu0 0.0
          %1534 = vmatpush1.msra.mxu0 %v1373
          %1535 = vmatprep.subr.mxu0 0.0
          %1536 = vmatpush1.msra.mxu0 %v1374
          %1537 = vmatprep.subr.mxu0 0.0
          %1538 = vmatpush1.msra.mxu0 %v1375
          %1539 = vmatprep.subr.mxu0 0.0
          %1540 = vmatpush1.msra.mxu0 %v1376
          %1541 = vmatprep.subr.mxu0 0.0
          %1542 = vmatpush1.msra.mxu0 %v1377
          %1543 = vmatprep.subr.mxu0 0.0
          %1544 = vmatpush1.msra.mxu0 %v1378
          %1545 = vmatprep.subr.mxu0 0.0
          %1546 = vmatpush1.msra.mxu0 %v1379
          %1547 = vmatprep.subr.mxu0 0.0
          %1548 = vmatpush1.msra.mxu0 %v1380
          %1549 = vmatprep.subr.mxu0 0.0
          %1550 = vmatpush1.msra.mxu0 %v1381
          %1551 = vmatprep.subr.mxu0 0.0
          %1552 = vmatpush1.msra.mxu0 %v1382
          %1553 = vmatprep.subr.mxu0 0.0
          %1554 = vmatpush1.msra.mxu0 %v1383
          %1555 = vmatprep.subr.mxu0 0.0
          %1556 = vmatpush1.msra.mxu0 %v1384
          %1557 = vmatprep.subr.mxu0 0.0
          %1558 = vmatpush1.msra.mxu0 %v1385
          %1559 = vmatprep.mubr.f32.mxu0 %v1319
          %1560 = vmatmul.mubr.f32.gmra.mrb[0].mxu0 %v1318
          %v1561 = vpop.f32.mrb[0].mxu0
          %v1562 = vadd.f32 %v1492, %v1561
          %v1563 = vpop.f32.mrb[0].mxu0
          %1564 = vdwg.mxu0
          %1565 = vmatprep.subr.mxu0 0.0
          %1566 = vmatpush1.msra.mxu0 %v1386
          %1567 = vmatprep.subr.mxu0 0.0
          %1568 = vmatpush1.msra.mxu0 %v1387
          %1569 = vmatprep.subr.mxu0 0.0
          %1570 = vmatpush1.msra.mxu0 %v1388
          %1571 = vmatprep.subr.mxu0 0.0
          %1572 = vmatpush1.msra.mxu0 %v1389
          %1573 = vmatprep.subr.mxu0 0.0
          %1574 = vmatpush1.msra.mxu0 %v1390
          %1575 = vmatprep.subr.mxu0 0.0
          %1576 = vmatpush1.msra.mxu0 %v1391
          %1577 = vmatprep.subr.mxu0 0.0
          %1578 = vmatpush1.msra.mxu0 %v1392
          %1579 = vmatprep.subr.mxu0 0.0
          %1580 = vmatpush1.msra.mxu0 %v1393
          %1581 = vmatprep.subr.mxu0 0.0
          %1582 = vmatpush1.msra.mxu0 %v1394
          %1583 = vmatprep.subr.mxu0 0.0
          %1584 = vmatpush1.msra.mxu0 %v1395
          %1585 = vmatprep.subr.mxu0 0.0
          %1586 = vmatpush1.msra.mxu0 %v1396
          %1587 = vmatprep.subr.mxu0 0.0
          %1588 = vmatpush1.msra.mxu0 %v1397
          %1589 = vmatprep.subr.mxu0 0.0
          %1590 = vmatpush1.msra.mxu0 %v1398
          %1591 = vmatprep.subr.mxu0 0.0
          %1592 = vmatpush1.msra.mxu0 %v1399
          %1593 = vmatprep.subr.mxu0 0.0
          %1594 = vmatpush1.msra.mxu0 %v1400
          %1595 = vmatprep.subr.mxu0 0.0
          %1596 = vmatpush1.msra.mxu0 %v1401
          %1597 = vmatprep.subr.mxu0 0.0
          %1598 = vmatpush1.msra.mxu0 %v1402
          %1599 = vmatprep.subr.mxu0 0.0
          %1600 = vmatpush1.msra.mxu0 %v1403
          %1601 = vmatprep.subr.mxu0 0.0
          %1602 = vmatpush1.msra.mxu0 %v1404
          %1603 = vmatprep.subr.mxu0 0.0
          %1604 = vmatpush1.msra.mxu0 %v1405
          %1605 = vmatprep.subr.mxu0 0.0
          %1606 = vmatpush1.msra.mxu0 %v1406
          %1607 = vmatprep.subr.mxu0 0.0
          %1608 = vmatpush1.msra.mxu0 %v1407
          %1609 = vmatprep.subr.mxu0 0.0
          %1610 = vmatpush1.msra.mxu0 %v1408
          %1611 = vmatprep.subr.mxu0 0.0
          %1612 = vmatpush1.msra.mxu0 %v1409
          %1613 = vmatprep.subr.mxu0 0.0
          %1614 = vmatpush1.msra.mxu0 %v1410
          %1615 = vmatprep.subr.mxu0 0.0
          %1616 = vmatpush1.msra.mxu0 %v1411
          %1617 = vmatprep.subr.mxu0 0.0
          %1618 = vmatpush1.msra.mxu0 %v1412
          %1619 = vmatprep.subr.mxu0 0.0
          %1620 = vmatpush1.msra.mxu0 %v1413
          %1621 = vmatprep.subr.mxu0 0.0
          %1622 = vmatpush1.msra.mxu0 %v1414
          %1623 = vmatprep.subr.mxu0 0.0
          %1624 = vmatpush1.msra.mxu0 %v1415
          %1625 = vmatprep.subr.mxu0 0.0
          %1626 = vmatpush1.msra.mxu0 %v1416
          %1627 = vmatprep.subr.mxu0 0.0
          %1628 = vmatpush1.msra.mxu0 %v1417
          %1629 = vmatprep.mubr.f32.mxu0 %v1321
          %1630 = vmatmul.mubr.f32.gmra.mrb[0].mxu0 %v1320
          %v1631 = vpop.f32.mrb[0].mxu0
          %v1632 = vadd.f32 %v1562, %v1631
          %v1633 = vpop.f32.mrb[0].mxu0
          %1634 = vdwg.mxu0
          %v1635 = vld [vmem:[%s631] sm:$0xff]
          %v1636 = vld [vmem:[%s5] sm:$0x1]
          %v1638 = vlaneseq
          %v1639 = vshrl.u32 %v1638, 7
          %v1640 = vsub.s32 0, %v1639
          %v1641 = vrot.slane %v1636, %v1640
          %v1643 = vld [vmem:[%s4] sm:$0x1]
          %1645 = vset.pattern.permute.xlu0 0
          %1646 = vperm.xlu0 %1645, %v1635
          %v1647 = vpop.permute.xlu0 %1646
          %v1649 = vlaneseq
          %v1650 = vshrl.u32 %v1649, 7
          %v1651 = vsub.s32 0, %v1650
          %v1652 = vrot.slane %v1643, %v1651
          %v1653 = vmul.f32 %v1647, %v1652
          %v1654 = vadd.f32 %v1641, %v1653
          %v1655 = vld [vmem:[%s4 + $0x1] sm:$0x1]
          %1656 = vset.pattern.permute.xlu0 1
          %1657 = vperm.xlu0 %1656, %v1635
          %v1658 = vpop.permute.xlu0 %1657
          %v1660 = vlaneseq
          %v1661 = vshrl.u32 %v1660, 7
          %v1662 = vsub.s32 0, %v1661
          %v1663 = vrot.slane %v1655, %v1662
          %v1664 = vmul.f32 %v1658, %v1663
          %v1665 = vadd.f32 %v1654, %v1664
          %v1666 = vld [vmem:[%s4 + $0x2] sm:$0x1]
          %1667 = vset.pattern.permute.xlu0 2
          %1668 = vperm.xlu0 %1667, %v1635
          %v1669 = vpop.permute.xlu0 %1668
          %v1671 = vlaneseq
          %v1672 = vshrl.u32 %v1671, 7
          %v1673 = vsub.s32 0, %v1672
          %v1674 = vrot.slane %v1666, %v1673
          %v1675 = vmul.f32 %v1669, %v1674
          %v1676 = vadd.f32 %v1665, %v1675
          %v1677 = vld [vmem:[%s4 + $0x3] sm:$0x1]
          %1678 = vset.pattern.permute.xlu0 3
          %1679 = vperm.xlu0 %1678, %v1635
          %v1680 = vpop.permute.xlu0 %1679
          %v1682 = vlaneseq
          %v1683 = vshrl.u32 %v1682, 7
          %v1684 = vsub.s32 0, %v1683
          %v1685 = vrot.slane %v1677, %v1684
          %v1686 = vmul.f32 %v1680, %v1685
          %v1687 = vadd.f32 %v1676, %v1686
          %v1688 = vmax.f32 %v1632, 0.0
          %v1689 = vmax.f32 %v1687, 0.0
          %v1690 = vld [vmem:[%s6] sm:$0xff]
          %v1691 = vld [vmem:[%s6 + $0x8] sm:$0xff]
          %v1692 = vld [vmem:[%s6 + $0x10] sm:$0xff]
          %v1693 = vld [vmem:[%s6 + $0x18] sm:$0xff]
          %v1694 = vld [vmem:[%s6 + $0x20] sm:$0xff]
          %v1695 = vld [vmem:[%s6 + $0x28] sm:$0xff]
          %v1696 = vld [vmem:[%s6 + $0x30] sm:$0xff]
          %v1697 = vld [vmem:[%s6 + $0x38] sm:$0xff]
          %v1698 = vld [vmem:[%s6 + $0x40] sm:$0xff]
          %v1699 = vld [vmem:[%s6 + $0x48] sm:$0xff]
          %v1700 = vld [vmem:[%s6 + $0x50] sm:$0xff]
          %v1701 = vld [vmem:[%s6 + $0x58] sm:$0xff]
          %v1702 = vld [vmem:[%s6 + $0x60] sm:$0xff]
          %v1703 = vld [vmem:[%s6 + $0x68] sm:$0xff]
          %v1704 = vld [vmem:[%s6 + $0x70] sm:$0xff]
          %v1705 = vld [vmem:[%s6 + $0x78] sm:$0xff]
          %v1706 = vld [vmem:[%s7] sm:$0xff]
          %v1707 = vld [vmem:[%s7 + $0x8] sm:$0xff]
          %v1708 = vld [vmem:[%s7 + $0x10] sm:$0xff]
          %v1709 = vld [vmem:[%s7 + $0x18] sm:$0xff]
          %vm1710 = vcmask 261120
          %v1712 = vsel %vm1710, %v1689, 0
          %1714 = vmatprep.subr.mxu0 0.0
          %1715 = vmatpush1.msra.mxu0 %v1706
          %1716 = vmatprep.subr.mxu0 0.0
          %1717 = vmatpush1.msra.mxu0 %v1707
          %1718 = vmatprep.subr.mxu0 0.0
          %1719 = vmatpush1.msra.mxu0 %v1708
          %1720 = vmatprep.subr.mxu0 0.0
          %1721 = vmatpush1.msra.mxu0 %v1709
          %1722 = vmatprep.subr.mxu0 0.0
          %1723 = vmatpush1.msra.mxu0 0.0
          %1724 = vmatprep.subr.mxu0 0.0
          %1725 = vmatpush1.msra.mxu0 0.0
          %1726 = vmatprep.subr.mxu0 0.0
          %1727 = vmatpush1.msra.mxu0 0.0
          %1728 = vmatprep.subr.mxu0 0.0
          %1729 = vmatpush1.msra.mxu0 0.0
          %1730 = vmatprep.subr.mxu0 0.0
          %1731 = vmatpush1.msra.mxu0 0.0
          %1732 = vmatprep.subr.mxu0 0.0
          %1733 = vmatpush1.msra.mxu0 0.0
          %1734 = vmatprep.subr.mxu0 0.0
          %1735 = vmatpush1.msra.mxu0 0.0
          %1736 = vmatprep.subr.mxu0 0.0
          %1737 = vmatpush1.msra.mxu0 0.0
          %1738 = vmatprep.subr.mxu0 0.0
          %1739 = vmatpush1.msra.mxu0 0.0
          %1740 = vmatprep.subr.mxu0 0.0
          %1741 = vmatpush1.msra.mxu0 0.0
          %1742 = vmatprep.subr.mxu0 0.0
          %1743 = vmatpush1.msra.mxu0 0.0
          %1744 = vmatprep.subr.mxu0 0.0
          %1745 = vmatpush1.msra.mxu0 0.0
          %1746 = vmatprep.subr.mxu0 0.0
          %1747 = vmatpush1.msra.mxu0 0.0
          %1748 = vmatprep.subr.mxu0 0.0
          %1749 = vmatpush1.msra.mxu0 0.0
          %1750 = vmatprep.subr.mxu0 0.0
          %1751 = vmatpush1.msra.mxu0 0.0
          %1752 = vmatprep.subr.mxu0 0.0
          %1753 = vmatpush1.msra.mxu0 0.0
          %1754 = vmatprep.subr.mxu0 0.0
          %1755 = vmatpush1.msra.mxu0 0.0
          %1756 = vmatprep.subr.mxu0 0.0
          %1757 = vmatpush1.msra.mxu0 0.0
          %1758 = vmatprep.subr.mxu0 0.0
          %1759 = vmatpush1.msra.mxu0 0.0
          %1760 = vmatprep.subr.mxu0 0.0
          %1761 = vmatpush1.msra.mxu0 0.0
          %1762 = vmatprep.subr.mxu0 0.0
          %1763 = vmatpush1.msra.mxu0 0.0
          %1764 = vmatprep.subr.mxu0 0.0
          %1765 = vmatpush1.msra.mxu0 0.0
          %1766 = vmatprep.subr.mxu0 0.0
          %1767 = vmatpush1.msra.mxu0 0.0
          %1768 = vmatprep.subr.mxu0 0.0
          %1769 = vmatpush1.msra.mxu0 0.0
          %1770 = vmatprep.subr.mxu0 0.0
          %1771 = vmatpush1.msra.mxu0 0.0
          %1772 = vmatprep.subr.mxu0 0.0
          %1773 = vmatpush1.msra.mxu0 0.0
          %1774 = vmatprep.subr.mxu0 0.0
          %1775 = vmatpush1.msra.mxu0 0.0
          %1776 = vmatprep.subr.mxu0 0.0
          %1777 = vmatpush1.msra.mxu0 0.0
          %1778 = vmatprep.mubr.f32.mxu0 0.0
          %1779 = vmatmul.mubr.f32.gmra.mrb[0].mxu0 %v1712
          %v1780 = vpop.f32.mrb[0].mxu0
          %v1781 = vadd.f32 0.0, %v1780
          %v1782 = vpop.f32.mrb[0].mxu0
          %1783 = vdwg.mxu0
          %1784 = vmatprep.subr.mxu0 0.0
          %1785 = vmatpush1.msra.mxu0 %v1690
          %1786 = vmatprep.subr.mxu0 0.0
          %1787 = vmatpush1.msra.mxu0 %v1691
          %1788 = vmatprep.subr.mxu0 0.0
          %1789 = vmatpush1.msra.mxu0 %v1692
          %1790 = vmatprep.subr.mxu0 0.0
          %1791 = vmatpush1.msra.mxu0 %v1693
          %1792 = vmatprep.subr.mxu0 0.0
          %1793 = vmatpush1.msra.mxu0 %v1694
          %1794 = vmatprep.subr.mxu0 0.0
          %1795 = vmatpush1.msra.mxu0 %v1695
          %1796 = vmatprep.subr.mxu0 0.0
          %1797 = vmatpush1.msra.mxu0 %v1696
          %1798 = vmatprep.subr.mxu0 0.0
          %1799 = vmatpush1.msra.mxu0 %v1697
          %1800 = vmatprep.subr.mxu0 0.0
          %1801 = vmatpush1.msra.mxu0 %v1698
          %1802 = vmatprep.subr.mxu0 0.0
          %1803 = vmatpush1.msra.mxu0 %v1699
          %1804 = vmatprep.subr.mxu0 0.0
          %1805 = vmatpush1.msra.mxu0 %v1700
          %1806 = vmatprep.subr.mxu0 0.0
          %1807 = vmatpush1.msra.mxu0 %v1701
          %1808 = vmatprep.subr.mxu0 0.0
          %1809 = vmatpush1.msra.mxu0 %v1702
          %1810 = vmatprep.subr.mxu0 0.0
          %1811 = vmatpush1.msra.mxu0 %v1703
          %1812 = vmatprep.subr.mxu0 0.0
          %1813 = vmatpush1.msra.mxu0 %v1704
          %1814 = vmatprep.subr.mxu0 0.0
          %1815 = vmatpush1.msra.mxu0 %v1705
          %1816 = vmatprep.subr.mxu0 0.0
          %1817 = vmatpush1.msra.mxu0 0.0
          %1818 = vmatprep.subr.mxu0 0.0
          %1819 = vmatpush1.msra.mxu0 0.0
          %1820 = vmatprep.subr.mxu0 0.0
          %1821 = vmatpush1.msra.mxu0 0.0
          %1822 = vmatprep.subr.mxu0 0.0
          %1823 = vmatpush1.msra.mxu0 0.0
          %1824 = vmatprep.subr.mxu0 0.0
          %1825 = vmatpush1.msra.mxu0 0.0
          %1826 = vmatprep.subr.mxu0 0.0
          %1827 = vmatpush1.msra.mxu0 0.0
          %1828 = vmatprep.subr.mxu0 0.0
          %1829 = vmatpush1.msra.mxu0 0.0
          %1830 = vmatprep.subr.mxu0 0.0
          %1831 = vmatpush1.msra.mxu0 0.0
          %1832 = vmatprep.subr.mxu0 0.0
          %1833 = vmatpush1.msra.mxu0 0.0
          %1834 = vmatprep.subr.mxu0 0.0
          %1835 = vmatpush1.msra.mxu0 0.0
          %1836 = vmatprep.subr.mxu0 0.0
          %1837 = vmatpush1.msra.mxu0 0.0
          %1838 = vmatprep.subr.mxu0 0.0
          %1839 = vmatpush1.msra.mxu0 0.0
          %1840 = vmatprep.subr.mxu0 0.0
          %1841 = vmatpush1.msra.mxu0 0.0
          %1842 = vmatprep.subr.mxu0 0.0
          %1843 = vmatpush1.msra.mxu0 0.0
          %1844 = vmatprep.subr.mxu0 0.0
          %1845 = vmatpush1.msra.mxu0 0.0
          %1846 = vmatprep.subr.mxu0 0.0
          %1847 = vmatpush1.msra.mxu0 0.0
          %1848 = vmatprep.mubr.f32.mxu0 0.0
          %1849 = vmatmul.mubr.f32.gmra.mrb[0].mxu0 %v1688
          %v1850 = vpop.f32.mrb[0].mxu0
          %v1851 = vadd.f32 %v1781, %v1850
          %v1852 = vpop.f32.mrb[0].mxu0
          %1853 = vdwg.mxu0
          %v1854 = vld [vmem:[%s8] sm:$0x1]
          %v1856 = vlaneseq
          %v1857 = vshrl.u32 %v1856, 7
          %v1858 = vsub.s32 0, %v1857
          %v1859 = vrot.slane %v1854, %v1858
          %v1861 = vadd.f32 %v1851, %v1859
          %v1862 = vmax.f32 %v1861, 0.0
          %v1863 = vld [vmem:[%s9] sm:$0xff]
          %v1864 = vld [vmem:[%s9 + $0x8] sm:$0xff]
          %v1865 = vld [vmem:[%s9 + $0x10] sm:$0xff]
          %v1866 = vld [vmem:[%s9 + $0x18] sm:$0xff]
          %v1867 = vld [vmem:[%s9 + $0x20] sm:$0xff]
          %v1868 = vld [vmem:[%s9 + $0x28] sm:$0xff]
          %v1869 = vld [vmem:[%s9 + $0x30] sm:$0xff]
          %v1870 = vld [vmem:[%s9 + $0x38] sm:$0xff]
          %v1871 = vld [vmem:[%s10] sm:$0x1]
          %v1873 = vlaneseq
          %v1874 = vshrl.u32 %v1873, 7
          %v1875 = vsub.s32 0, %v1874
          %v1876 = vrot.slane %v1871, %v1875
          %vm1878 = vcmask 523264
          %v1880 = vsel %vm1878, %v1862, 0
          %1882 = vmatprep.subr.mxu0 0.0
          %1883 = vmatpush1.msra.mxu0 %v1863
          %1884 = vmatprep.subr.mxu0 0.0
          %1885 = vmatpush1.msra.mxu0 %v1864
          %1886 = vmatprep.subr.mxu0 0.0
          %1887 = vmatpush1.msra.mxu0 %v1865
          %1888 = vmatprep.subr.mxu0 0.0
          %1889 = vmatpush1.msra.mxu0 %v1866
          %1890 = vmatprep.subr.mxu0 0.0
          %1891 = vmatpush1.msra.mxu0 %v1867
          %1892 = vmatprep.subr.mxu0 0.0
          %1893 = vmatpush1.msra.mxu0 %v1868
          %1894 = vmatprep.subr.mxu0 0.0
          %1895 = vmatpush1.msra.mxu0 %v1869
          %1896 = vmatprep.subr.mxu0 0.0
          %1897 = vmatpush1.msra.mxu0 %v1870
          %1898 = vmatprep.subr.mxu0 0.0
          %1899 = vmatpush1.msra.mxu0 0.0
          %1900 = vmatprep.subr.mxu0 0.0
          %1901 = vmatpush1.msra.mxu0 0.0
          %1902 = vmatprep.subr.mxu0 0.0
          %1903 = vmatpush1.msra.mxu0 0.0
          %1904 = vmatprep.subr.mxu0 0.0
          %1905 = vmatpush1.msra.mxu0 0.0
          %1906 = vmatprep.subr.mxu0 0.0
          %1907 = vmatpush1.msra.mxu0 0.0
          %1908 = vmatprep.subr.mxu0 0.0
          %1909 = vmatpush1.msra.mxu0 0.0
          %1910 = vmatprep.subr.mxu0 0.0
          %1911 = vmatpush1.msra.mxu0 0.0
          %1912 = vmatprep.subr.mxu0 0.0
          %1913 = vmatpush1.msra.mxu0 0.0
          %1914 = vmatprep.subr.mxu0 0.0
          %1915 = vmatpush1.msra.mxu0 0.0
          %1916 = vmatprep.subr.mxu0 0.0
          %1917 = vmatpush1.msra.mxu0 0.0
          %1918 = vmatprep.subr.mxu0 0.0
          %1919 = vmatpush1.msra.mxu0 0.0
          %1920 = vmatprep.subr.mxu0 0.0
          %1921 = vmatpush1.msra.mxu0 0.0
          %1922 = vmatprep.subr.mxu0 0.0
          %1923 = vmatpush1.msra.mxu0 0.0
          %1924 = vmatprep.subr.mxu0 0.0
          %1925 = vmatpush1.msra.mxu0 0.0
          %1926 = vmatprep.subr.mxu0 0.0
          %1927 = vmatpush1.msra.mxu0 0.0
          %1928 = vmatprep.subr.mxu0 0.0
          %1929 = vmatpush1.msra.mxu0 0.0
          %1930 = vmatprep.subr.mxu0 0.0
          %1931 = vmatpush1.msra.mxu0 0.0
          %1932 = vmatprep.subr.mxu0 0.0
          %1933 = vmatpush1.msra.mxu0 0.0
          %1934 = vmatprep.subr.mxu0 0.0
          %1935 = vmatpush1.msra.mxu0 0.0
          %1936 = vmatprep.subr.mxu0 0.0
          %1937 = vmatpush1.msra.mxu0 0.0
          %1938 = vmatprep.subr.mxu0 0.0
          %1939 = vmatpush1.msra.mxu0 0.0
          %1940 = vmatprep.subr.mxu0 0.0
          %1941 = vmatpush1.msra.mxu0 0.0
          %1942 = vmatprep.subr.mxu0 0.0
          %1943 = vmatpush1.msra.mxu0 0.0
          %1944 = vmatprep.subr.mxu0 0.0
          %1945 = vmatpush1.msra.mxu0 0.0
          %1946 = vmatprep.mubr.f32.mxu0 0.0
          %1947 = vmatmul.mubr.f32.gmra.mrb[0].mxu0 %v1880
          %v1948 = vpop.f32.mrb[0].mxu0
          %v1949 = vadd.f32 %v1876, %v1948
          %v1950 = vpop.f32.mrb[0].mxu0
          %1951 = vdwg.mxu0
          %vm1952 = vcmask 15360
          %1953 = vst.msk [vmem:[#allocation4] sm:$0xff] %vm1952, %v1949
        $region109: #{tpu_custom_call.1} parent=96 // pred_fallthru
          _
        // Predicated region
        $region110: #{tpu_custom_call.1} parent=96 // pred_check
          %p1954 = pneg %p296
        $region111: #{tpu_custom_call.1} parent=96 // pred_check_branch
          %1956 = sbr.rel (%p1954) target = $region113
        $region112: #{tpu_custom_call.1} parent=96 // pred_region
          %s1957 = smul.u32 4, %s27
          %s1958 = ssub.s32 1, %s1957
          %s1959 = smul.u32 32, %s1958
          %s1961 = ssub.s32 128, %s1959
          %1962 = vsyncadd [#allocation5], %s1961
          %p1963 = scmp.ne.s32.totalorder 0, %s1959
          %s1964 = smul.addr %s1957, 32
          %s1965 = scalar_lea.hbm %s11, %s1964
          %s1966 = smul.u32 2, %s1958
          %s1967 = sshll.u32 [#allocation4], 4
          %s1968 = int_to_ptr.vmem [resolvable:$true] %s1967
          %s1969 = sshll.u32 %s1966, 4
          %1973 = dma.vmem_to_hbm [thread:$0]  (%p1963), %s1968, %s1969, %s1965, [#allocation5], 32, 32, 2
        $region113: #{tpu_custom_call.1} parent=96 // pred_fallthru
          _
        // Predicated region
        $region114: #{tpu_custom_call.1} parent=96 // pred_check
          %p1974 = pneg %p296
        $region115: #{tpu_custom_call.1} parent=96 // pred_check_branch
          %1976 = sbr.rel (%p1974) target = $region117
        $region116: #{tpu_custom_call.1} parent=96 // pred_region
          %1977 = dma.done [#allocation5], 128
        $region117: #{tpu_custom_call.1} parent=96 // pred_fallthru
          _
      $region97: #{tpu_custom_call.1} parent=5 // pred_fallthru
        _
      %p1978 = scmp.le.s32.totalorder 2, %s18
      // Predicated region
      $region118: #{tpu_custom_call.1} parent=5 // pred_check
        %p1979 = pneg %p1978
      $region119: #{tpu_custom_call.1} parent=5 // pred_check_branch
        %1981 = sbr.rel (%p1979) target = $region121
      $region120: #{tpu_custom_call.1} parent=5 // pred_region
        %s1982 = ssub.s32 %s18, 2
      $region121: #{tpu_custom_call.1} parent=5 // pred_fallthru
        _
    $region6: #{tpu_custom_call.1} parent=1 // loop_footer
      %s22 = sadd.s32 1, %s18
    $region7: #{tpu_custom_call.1} parent=1 // loop_footer_branch
      %17 = sbr.rel target = $region3
    $region8: #{tpu_custom_call.1} parent=1 // loop_exit
      _
    %1983 = vsyncpa [#allocation5], 1
    %s1984 = scalar_lea.sflag [#allocation5], 1
    %1985 = vsyncpa %s1984, 1

</llo_original>
